<compile_context>
chip_gen: v7x
topology: tpu7x:2x2x1
jax: 0.10.0
libtpu: 0.0.40
codegen_flags: <defaults>
</compile_context>

<pallas_src>
import functools
import math

import jax
import jax.numpy as jnp
from jax.experimental import pallas as pl
from jax.experimental.pallas import tpu as pltpu


def _round_up(n, m):
    return ((n + m - 1) // m) * m


# ----------------------------------------------------------------------------- kernel A
def _fourier_kernel(x_ref, wt_ref, o_ref, *, nlayers, half):
    # x_ref: (1, txd, C); wt_ref: (C, L*half); o_ref: (L, 1, txd, 2*half)
    proj = jnp.dot(x_ref[0], wt_ref[...], preferred_element_type=jnp.float32)
    for l in range(nlayers):
        p = proj[:, l * half:(l + 1) * half]
        o_ref[l, 0] = jnp.concatenate([jnp.sin(p), jnp.cos(p)], axis=-1).astype(o_ref.dtype)


# ----------------------------------------------------------------------------- kernel B
def _resnet_kernel(c_ref, g_ref, b_ref, wi_ref, bi_ref, wb_ref, bb_ref, wo_ref, bo_ref,
                   o_ref, *, nblock, eps):
    # c_ref: (1, tcc, K); o_ref: (1, 1, tcc, H)
    x = c_ref[0].astype(jnp.float32)
    mu = jnp.mean(x, -1, keepdims=True)
    var = jnp.mean(jnp.square(x - mu), -1, keepdims=True)
    h = (x - mu) * jax.lax.rsqrt(var + eps)
    h = h * g_ref[0, 0] + b_ref[0, 0]
    h = jnp.dot(h, wi_ref[0], preferred_element_type=jnp.float32) + bi_ref[0, 0]
    for k in range(nblock):
        hk = jnp.dot(h, wb_ref[0, k], preferred_element_type=jnp.float32) + bb_ref[0, k]
        h = h + jnp.maximum(hk, 0.0)
    y = jnp.dot(h, wo_ref[0], preferred_element_type=jnp.float32) + bo_ref[0, 0]
    o_ref[0, 0] = y.astype(o_ref.dtype)


# ----------------------------------------------------------------------------- kernel C
def _mfn_mix_kernel(res_ref, filt_ref, g_ref, b_ref, w_ref, lb_ref, wo_ref, bo_ref,
                    o_ref, *, nlayers, eps):
    # res_ref:  (L, 1, tmr, H)   per-layer ResNet(code) rows for this tile
    # filt_ref: (L, 1, tdm, H)   per-layer Fourier(coord) rows for this tile
    # o_ref:    (1, tmr, tdm)
    L = nlayers
    _, _, tmr, H = res_ref.shape
    tdm = filt_ref.shape[2]
    rows = tmr * tdm

    h = res_ref[0, 0][:, None, :] * filt_ref[0, 0][None, :, :]          # (tmr, tdm, H)
    for l in range(1, L):
        mu = jnp.mean(h, -1, keepdims=True)
        var = jnp.mean(jnp.square(h - mu), -1, keepdims=True)
        hn = (h - mu) * jax.lax.rsqrt(var + eps)
        hn = hn * g_ref[l - 1, 0] + b_ref[l - 1, 0]
        h2 = jnp.dot(hn.reshape(rows, H), w_ref[l - 1],
                     preferred_element_type=jnp.float32) + lb_ref[l - 1, 0]
        h = (h2.reshape(tmr, tdm, H) + res_ref[l, 0][:, None, :]) * filt_ref[l, 0][None, :, :]

    y = jnp.sum(h * wo_ref[0], axis=-1) + bo_ref[0, 0]                  # (tmr, tdm)
    o_ref[0] = y.astype(o_ref.dtype)


# ----------------------------------------------------------------------------- wrapper
def inr2_forward(coord, code, params, *, input_scale=64.0,
                 tile_domain=512, tile_code=256, tile_mix_rows=8):
    f32 = jnp.float32
    B = coord.shape[0]
    C = coord.shape[-1]
    K = code.shape[-1]
    domain = coord.shape[2:-2]
    T, S = code.shape[1], code.shape[-2]
    assert coord.shape[1] == 1 and coord.shape[-2] == 1, "coord nsteps/state dims must be size 1"
    assert all(s == 1 for s in code.shape[2:-2]), "code domain dims must be size 1"

    L, Hh, _ = params["filt_w"].shape
    H = 2 * Hh
    assert L >= 2
    D = math.prod(domain) if domain else 1
    TS = T * S
    scale = input_scale / math.sqrt(L)

    # ---- tile sizes (no divisibility asserts: pad up, slice off at the end) ----
    txd = max(8, (tile_domain // 8) * 8)
    txd = min(txd, _round_up(D, 8))
    Dp = _round_up(D, txd)
    tcc = max(8, (tile_code // 8) * 8)
    tcc = min(tcc, _round_up(TS, 8))
    TSp = _round_up(TS, tcc)
    tmr = math.gcd(TSp, max(8, (tile_mix_rows // 8) * 8))
    if Dp % 512 == 0:
        tdm = 512
    elif Dp % 128 == 0 and Dp > 1024:
        tdm = 128
    else:
        tdm = Dp  # full-domain block; last dim equals the array dim (lane-dense enough)

    # ---- unique coord rows / unique code rows (no broadcast materialization) ----
    x = coord.reshape(B, D, C).astype(f32)
    if Dp != D:
        x = jnp.pad(x, ((0, 0), (0, Dp - D), (0, 0)))
    c = code.reshape(B, TS, K).astype(f32)
    if TSp != TS:
        c = jnp.pad(c, ((0, 0), (0, TSp - TS), (0, 0)))

    # ---- kernel A: all L Fourier filters, one fused projection ----
    wf_t = (params["filt_w"].astype(f32) * scale).reshape(L * Hh, C).T      # (C, L*Hh)
    filt = pl.pallas_call(
        functools.partial(_fourier_kernel, nlayers=L, half=Hh),
        out_shape=jax.ShapeDtypeStruct((L, B, Dp, H), f32),
        grid_spec=pltpu.PrefetchScalarGridSpec(
            num_scalar_prefetch=0,
            grid=(B, Dp // txd),
            in_specs=[
                pl.BlockSpec((1, txd, C), lambda b, j: (b, j, 0)),
                pl.BlockSpec((C, L * Hh), lambda b, j: (0, 0)),
            ],
            out_specs=pl.BlockSpec((L, 1, txd, H), lambda b, j: (0, b, j, 0)),
        ),
        compiler_params=pltpu.CompilerParams(
            dimension_semantics=("parallel", "parallel")),
    )(x, wf_t)

    # ---- kernel B: the L ResNet1d heads on the unique code rows ----
    r_ln_g = params["r_ln_g"].reshape(L, 1, K).astype(f32)
    r_ln_b = params["r_ln_b"].reshape(L, 1, K).astype(f32)
    r_w_in_t = jnp.swapaxes(params["r_w_in"], 1, 2).astype(f32)             # (L, K, RH)
    r_b_in = params["r_b_in"][:, None, :].astype(f32)                       # (L, 1, RH)
    r_w_blk_t = jnp.swapaxes(params["r_w_blk"], 2, 3).astype(f32)           # (L, nb, RH, RH)
    r_b_blk = params["r_b_blk"].astype(f32)                                 # (L, nb, RH)
    r_w_out_t = jnp.swapaxes(params["r_w_out"], 1, 2).astype(f32)           # (L, RH, H)
    r_b_out = params["r_b_out"][:, None, :].astype(f32)                     # (L, 1, H)
    RH = r_w_in_t.shape[-1]
    nb = r_w_blk_t.shape[1]

    res = pl.pallas_call(
        functools.partial(_resnet_kernel, nblock=nb, eps=1e-5),
        out_shape=jax.ShapeDtypeStruct((L, B, TSp, H), f32),
        grid_spec=pltpu.PrefetchScalarGridSpec(
            num_scalar_prefetch=0,
            grid=(L, B, TSp // tcc),
            in_specs=[
                pl.BlockSpec((1, tcc, K), lambda l, b, i: (b, i, 0)),
                pl.BlockSpec((1, 1, K), lambda l, b, i: (l, 0, 0)),
                pl.BlockSpec((1, 1, K), lambda l, b, i: (l, 0, 0)),
                pl.BlockSpec((1, K, RH), lambda l, b, i: (l, 0, 0)),
                pl.BlockSpec((1, 1, RH), lambda l, b, i: (l, 0, 0)),
                pl.BlockSpec((1, nb, RH, RH), lambda l, b, i: (l, 0, 0, 0)),
                pl.BlockSpec((1, nb, RH), lambda l, b, i: (l, 0, 0)),
                pl.BlockSpec((1, RH, H), lambda l, b, i: (l, 0, 0)),
                pl.BlockSpec((1, 1, H), lambda l, b, i: (l, 0, 0)),
            ],
            out_specs=pl.BlockSpec((1, 1, tcc, H), lambda l, b, i: (l, b, i, 0)),
        ),
        compiler_params=pltpu.CompilerParams(
            dimension_semantics=("parallel", "parallel", "parallel")),
    )(c, r_ln_g, r_ln_b, r_w_in_t, r_b_in, r_w_blk_t, r_b_blk, r_w_out_t, r_b_out)

    # ---- kernel C: MFN mixing over the (code-row x domain-row) outer product ----
    ln_g = params["ln_g"][:, None, :].astype(f32)                            # (L-1, 1, H)
    ln_b = params["ln_b"][:, None, :].astype(f32)
    lin_w_t = jnp.swapaxes(params["lin_w"], 1, 2).astype(f32)                # (L-1, H, H)
    lin_b = params["lin_b"][:, None, :].astype(f32)
    wout = params["wout"].reshape(1, H).astype(f32)
    bout = params["bout"].reshape(1, 1).astype(f32)

    rows_total = B * TSp * Dp
    cost = pl.CostEstimate(
        flops=int(rows_total * (2 * H * H * (L - 1) + 14 * H * L)),
        transcendentals=int(rows_total * (L - 1)),
        bytes_accessed=int(res.size * 4 + filt.size * 4 + rows_total * 4),
    )

    out_flat = pl.pallas_call(
        functools.partial(_mfn_mix_kernel, nlayers=L, eps=1e-5),
        out_shape=jax.ShapeDtypeStruct((B, TSp, Dp), f32),
        grid_spec=pltpu.PrefetchScalarGridSpec(
            num_scalar_prefetch=0,
            grid=(B, TSp // tmr, Dp // tdm),
            in_specs=[
                pl.BlockSpec((L, 1, tmr, H), lambda b, i, j: (0, b, i, 0)),
                pl.BlockSpec((L, 1, tdm, H), lambda b, i, j: (0, b, j, 0)),
                pl.BlockSpec((L - 1, 1, H), lambda b, i, j: (0, 0, 0)),
                pl.BlockSpec((L - 1, 1, H), lambda b, i, j: (0, 0, 0)),
                pl.BlockSpec((L - 1, H, H), lambda b, i, j: (0, 0, 0)),
                pl.BlockSpec((L - 1, 1, H), lambda b, i, j: (0, 0, 0)),
                pl.BlockSpec((1, H), lambda b, i, j: (0, 0)),
                pl.BlockSpec((1, 1), lambda b, i, j: (0, 0)),
            ],
            out_specs=pl.BlockSpec((1, tmr, tdm), lambda b, i, j: (b, i, j)),
        ),
        compiler_params=pltpu.CompilerParams(
            dimension_semantics=("parallel", "parallel", "parallel")),
        cost_estimate=cost,
    )(res, filt, ln_g, ln_b, lin_w_t, lin_b, wout, bout)

    # strip padding, restore (B, T, *domain, S) layout
    out = out_flat[:, :TS, :D].reshape(B, T, S, D)
    out = jnp.moveaxis(out, 2, 3).reshape((B, T) + tuple(domain) + (S,))
    return out, coord


# ----------------------------------------------------------------------------- params
def init_params(key, coord_dim, code_dim, hidden_dim, nlayers, res_hidden=512, nblock=3):
    L, H, Hh, K = nlayers, hidden_dim, hidden_dim // 2, code_dim
    ks = jax.random.split(key, 12)

    def u(k, shape, fan_in):
        b = 1.0 / math.sqrt(fan_in)
        return jax.random.uniform(k, shape, jnp.float32, -b, b)

    return {
        "filt_w": u(ks[0], (L, Hh, coord_dim), coord_dim),
        "ln_g": jnp.ones((L - 1, H), jnp.float32),
        "ln_b": jnp.zeros((L - 1, H), jnp.float32),
        "lin_w": u(ks[1], (L - 1, H, H), H),
        "lin_b": u(ks[2], (L - 1, H), H),
        "wout": u(ks[3], (1, H), H),
        "bout": u(ks[4], (1,), H),
        "r_ln_g": jnp.ones((L, K), jnp.float32),
        "r_ln_b": jnp.zeros((L, K), jnp.float32),
        "r_w_in": u(ks[5], (L, res_hidden, K), K),
        "r_b_in": u(ks[6], (L, res_hidden), K),
        "r_w_blk": u(ks[7], (L, nblock, res_hidden, res_hidden), res_hidden),
        "r_b_blk": u(ks[8], (L, nblock, res_hidden), res_hidden),
        "r_w_out": u(ks[9], (L, H, res_hidden), res_hidden),
        "r_b_out": u(ks[10], (L, H), res_hidden),
    }


# ----------------------------------------------------------------------------- reference
def inr2_reference(coord, code, params, *, input_scale=64.0):
    f32 = jnp.float32
    L, Hh, _ = params["filt_w"].shape
    scale = input_scale / math.sqrt(L)
    hp = jax.lax.Precision.HIGHEST

    def layer_norm(v, g, b, eps=1e-5):
        mu = jnp.mean(v, -1, keepdims=True)
        var = jnp.mean(jnp.square(v - mu), -1, keepdims=True)
        return (v - mu) * jax.lax.rsqrt(var + eps) * g + b

    def fourier(x, w):
        proj = jnp.dot(x, (w * scale).T, precision=hp)
        return jnp.concatenate([jnp.sin(proj), jnp.cos(proj)], -1)

    def resnet(cde, l):
        h = layer_norm(cde, params["r_ln_g"][l], params["r_ln_b"][l])
        h = jnp.dot(h, params["r_w_in"][l].T, precision=hp) + params["r_b_in"][l]
        for k in range(params["r_w_blk"].shape[1]):
            h = h + jax.nn.relu(
                jnp.dot(h, params["r_w_blk"][l, k].T, precision=hp) + params["r_b_blk"][l, k])
        return jnp.dot(h, params["r_w_out"][l].T, precision=hp) + params["r_b_out"][l]

    x = coord.astype(f32)
    cde = code.astype(f32)
    out = resnet(cde, 0) * fourier(x, params["filt_w"][0])
    for l in range(1, L):
        out = layer_norm(out, params["ln_g"][l - 1], params["ln_b"][l - 1])
        out = jnp.dot(out, params["lin_w"][l - 1].T, precision=hp) + params["lin_b"][l - 1]
        out = (out + resnet(cde, l)) * fourier(x, params["filt_w"][l])
    out = (jnp.dot(out, params["wout"].T, precision=hp) + params["bout"])[..., 0]
    return out, coord


if __name__ == "__main__":
    key = jax.random.PRNGKey(0)
    kp, kx, kc = jax.random.split(key, 3)

    B, T, S = 2, 3, 2
    domain = (8, 8)
    coord_dim, code_dim = 2, 8
    hidden_dim, nlayers = 32, 3          # small test config (module defaults are 128 / 6)

    params = init_params(kp, coord_dim, code_dim, hidden_dim, nlayers)
    coord = jax.random.uniform(kx, (B, 1) + domain + (1, coord_dim), jnp.float32, -1.0, 1.0)
    code = jax.random.normal(kc, (B, T) + (1,) * len(domain) + (S, code_dim), jnp.float32)

    out, x_ret = inr2_forward(coord, code, params, input_scale=64.0)
    out = jax.block_until_ready(out)

    ref_out, _ = inr2_reference(coord, code, params, input_scale=64.0)
    assert out.shape == (B, T) + domain + (S,), out.shape
    assert x_ret.shape == coord.shape
    err = float(jnp.max(jnp.abs(out - ref_out)) / (1e-6 + jnp.max(jnp.abs(ref_out))))
    assert err < 2e-3, f"mismatch vs reference: rel err {err}"

    print("KERNEL_OK")
</pallas_src>

<mosaic_0001>
module attributes {stable_mosaic.version = 11 : i64} {
  func.func @_fourier_kernel(%arg0: i32, %arg1: i32, %arg2: memref<1x64x2xf32, #tpu.memory_space<vmem>>, %arg3: memref<2x48xf32, #tpu.memory_space<vmem>>, %arg4: memref<3x1x64x32xf32, #tpu.memory_space<vmem>>) attributes {dimension_semantics = [#tpu.dimension_semantics<parallel>, #tpu.dimension_semantics<parallel>], iteration_bounds = array<i64: 2, 1>, scalar_prefetch = 0 : i64, scratch_operands = 0 : i64, tpu.core_type = #tpu.core_type<tc>, window_params = [{transform_indices = @transform_0, window_bounds = array<i64: 1, 64, 2>}, {pipeline_mode = #tpu.pipeline_mode<synchronous>, transform_indices = @transform_1, window_bounds = array<i64: 2, 48>}, {transform_indices = @transform_2, window_bounds = array<i64: 3, 1, 64, 32>}]} {
    %c0 = arith.constant 0 : index
    %c0_0 = arith.constant 0 : index
    %c0_1 = arith.constant 0 : index
    %0 = vector.load %arg2[%c0, %c0_0, %c0_1] : memref<1x64x2xf32, #tpu.memory_space<vmem>>, vector<1x64x2xf32>
    %1 = vector.shape_cast %0 : vector<1x64x2xf32> to vector<64x2xf32>
    %c0_2 = arith.constant 0 : index
    %c0_3 = arith.constant 0 : index
    %2 = vector.load %arg3[%c0_2, %c0_3] : memref<2x48xf32, #tpu.memory_space<vmem>>, vector<2x48xf32>
    %cst = arith.constant dense<0.000000e+00> : vector<64x48xf32>
    %3 = tpu.matmul %1, %2, %cst {dimension_numbers = #tpu.dot_dimension_numbers<[1], [0], [0], [1], [0, 0, 1, 1], [], []>} : vector<64x2xf32>, vector<2x48xf32>, vector<64x48xf32> -> vector<64x48xf32>
    %4 = vector.extract_strided_slice %3 {offsets = [0, 0], sizes = [64, 16], strides = [1, 1]} : vector<64x48xf32> to vector<64x16xf32>
    %5 = math.sin %4 : vector<64x16xf32>
    %6 = math.cos %4 : vector<64x16xf32>
    %7 = tpu.concatenate %5, %6 in 1 : vector<64x16xf32>, vector<64x16xf32> -> vector<64x32xf32>
    %c0_4 = arith.constant 0 : index
    %c0_5 = arith.constant 0 : index
    %c0_6 = arith.constant 0 : index
    %c0_7 = arith.constant 0 : index
    %8 = vector.load %arg4[%c0_4, %c0_5, %c0_6, %c0_7] : memref<3x1x64x32xf32, #tpu.memory_space<vmem>>, vector<1x1x64x32xf32>
    %9 = vector.shape_cast %8 : vector<1x1x64x32xf32> to vector<64x32xf32>
    %10 = vector.shape_cast %7 : vector<64x32xf32> to vector<1x1x64x32xf32>
    tpu.vector_store %arg4[%c0_4, %c0_5, %c0_6, %c0_7], %10 {strides = array<i32>} : memref<3x1x64x32xf32, #tpu.memory_space<vmem>>, vector<1x1x64x32xf32>,
    %11 = vector.extract_strided_slice %3 {offsets = [0, 16], sizes = [64, 16], strides = [1, 1]} : vector<64x48xf32> to vector<64x16xf32>
    %12 = math.sin %11 : vector<64x16xf32>
    %13 = math.cos %11 : vector<64x16xf32>
    %14 = tpu.concatenate %12, %13 in 1 : vector<64x16xf32>, vector<64x16xf32> -> vector<64x32xf32>
    %c1 = arith.constant 1 : index
    %c0_8 = arith.constant 0 : index
    %c0_9 = arith.constant 0 : index
    %c0_10 = arith.constant 0 : index
    %15 = vector.load %arg4[%c1, %c0_8, %c0_9, %c0_10] : memref<3x1x64x32xf32, #tpu.memory_space<vmem>>, vector<1x1x64x32xf32>
    %16 = vector.shape_cast %15 : vector<1x1x64x32xf32> to vector<64x32xf32>
    %17 = vector.shape_cast %14 : vector<64x32xf32> to vector<1x1x64x32xf32>
    tpu.vector_store %arg4[%c1, %c0_8, %c0_9, %c0_10], %17 {strides = array<i32>} : memref<3x1x64x32xf32, #tpu.memory_space<vmem>>, vector<1x1x64x32xf32>,
    %18 = vector.extract_strided_slice %3 {offsets = [0, 32], sizes = [64, 16], strides = [1, 1]} : vector<64x48xf32> to vector<64x16xf32>
    %19 = math.sin %18 : vector<64x16xf32>
    %20 = math.cos %18 : vector<64x16xf32>
    %21 = tpu.concatenate %19, %20 in 1 : vector<64x16xf32>, vector<64x16xf32> -> vector<64x32xf32>
    %c2 = arith.constant 2 : index
    %c0_11 = arith.constant 0 : index
    %c0_12 = arith.constant 0 : index
    %c0_13 = arith.constant 0 : index
    %22 = vector.load %arg4[%c2, %c0_11, %c0_12, %c0_13] : memref<3x1x64x32xf32, #tpu.memory_space<vmem>>, vector<1x1x64x32xf32>
    %23 = vector.shape_cast %22 : vector<1x1x64x32xf32> to vector<64x32xf32>
    %24 = vector.shape_cast %21 : vector<64x32xf32> to vector<1x1x64x32xf32>
    tpu.vector_store %arg4[%c2, %c0_11, %c0_12, %c0_13], %24 {strides = array<i32>} : memref<3x1x64x32xf32, #tpu.memory_space<vmem>>, vector<1x1x64x32xf32>,
    return
  }
  func.func @transform_0(%arg0: i32, %arg1: i32) -> (i32, i32, i32) {
    %c0_i32 = arith.constant 0 : i32
    %c0_i32_0 = arith.constant 0 : i32
    return %arg0, %arg1, %c0_i32 : i32, i32, i32
  }
  func.func @transform_1(%arg0: i32, %arg1: i32) -> (i32, i32) {
    %c0_i32 = arith.constant 0 : i32
    %c0_i32_0 = arith.constant 0 : i32
    %c0_i32_1 = arith.constant 0 : i32
    return %c0_i32, %c0_i32_0 : i32, i32
  }
  func.func @transform_2(%arg0: i32, %arg1: i32) -> (i32, i32, i32, i32) {
    %c0_i32 = arith.constant 0 : i32
    %c0_i32_0 = arith.constant 0 : i32
    %c0_i32_1 = arith.constant 0 : i32
    return %c0_i32, %arg0, %arg1, %c0_i32_0 : i32, i32, i32, i32
  }
}

</mosaic_0001>

<llo_original>
// kernel: tpu_custom_call.1
$region0: #{tpu_custom_call.1}
  #allocation0 [shape = 'u32[]', space=smem, size = 0x4, offset = 0x4, fixed_abs, tag = 'smem constant byte address 0x4 - core index']
  #allocation1 [shape = 'u32[144,128]{1,0:T(1,128)}', space=vmem, size = 0x12000, scoped, tag = 'internal scratch']
  %s0 = inlined_call_operand.vmem [shape: f32[2,64,2], index: 0, kind: input, shape index: {}]
  %s1 = inlined_call_operand.vmem [shape: f32[2,48], index: 1, kind: input, shape index: {}]
  %s2 = inlined_call_operand.vmem [shape: f32[3,2,64,32], index: 2, kind: output, shape index: {}]
  %s3 = sld [smem:[#allocation0]]
  $region75: #{tpu_custom_call.1} parent=0
    _
  %s5 = ssub.s32 1, %s3
  %s6 = scalar_select 0, %s5, %s3
  $region1: #{tpu_custom_call.1} parent=0
    #allocation2 [shape = 'u8[196608]{0}', space=vmem, size = 0x30000, scoped, tag = 'output window, operand 0']
    loop: start=0, step=1, limit=4
    $region2: #{tpu_custom_call.1} parent=1 // loop_pre_header
      _
    $region3: #{tpu_custom_call.1} parent=1 // loop_header
      %s8 = sphi 0, %s12
      %p9 = scmp.ge.s32.totalorder %s8, 4
      %s15 = sphi 0, %s27
      %s16 = sphi 0, %s23
      %s17 = sphi 0, %s15
      %s18 = sphi 0, %s16
      %s19 = sphi 0, %s17
      %s20 = sphi 0, %s18
      %s32 = sphi 0, %s34
      %s35 = sphi 0, %s32
      %s36 = sphi 0, %s35
      %s52 = sphi 0, %s36
      %s56 = sphi 0, %s56
      %s58 = sphi 0, %s56
      %s59 = sphi 0, %s58
      %s73 = sphi 0, %s59
      %s81 = sphi 0, %s83
      %s84 = sphi 0, %s81
      %s85 = sphi 0, %s84
      %s101 = sphi 0, %s85
    $region4: #{tpu_custom_call.1} parent=1 // loop_header_branch
      %11 = sbr.rel (%p9) target = $region8
    $region5: #{tpu_custom_call.1} parent=1 // loop_body
      %s13 = ssub.s32 %s8, 1
      %s14 = ssub.s32 %s8, 2
      %s21 = sadd.s32 1, %s16
      %p22 = scmp.ge.s32.totalorder %s21, 1
      %s23 = scalar_select %p22, 0, %s21
      %s24 = sadd.s32 1, %s15
      %s25 = scalar_select %p22, %s24, %s15
      %p26 = scmp.ge.s32.totalorder %s25, 2
      %s27 = scalar_select %p26, 0, %s25
      %s28 = ssub.s32 %s15, %s27
      %s29 = ssub.s32 %s16, %s23
      %s30 = sor.u32 %s28, %s29
      %p31 = scmp.eq.s32.totalorder %s30, 0
      %s33 = sadd.s32 %s32, 1
      %s34 = scalar_select %p31, %s32, %s33
      %p37 = pneg %p31
      %p38 = scmp.eq.s32.totalorder %s8, 1
      %p39 = por %p37, %p38
      %p40 = scmp.ne.s32.totalorder %s32, %s35
      %p41 = scmp.eq.s32.totalorder %s8, 0
      %p42 = por %p40, %p41
      %p43 = scmp.ne.s32.totalorder %s32, %s35
      %p44 = scmp.eq.s32.totalorder %s13, 1
      %p45 = por %p43, %p44
      %p46 = scmp.ne.s32.totalorder %s35, %s36
      %p47 = scmp.eq.s32.totalorder %s13, 0
      %p48 = por %p46, %p47
      %p49 = scmp.ne.s32.totalorder %s35, %s36
      %p50 = scmp.eq.s32.totalorder %s14, 1
      %p51 = por %p49, %p50
      %p53 = scmp.ne.s32.totalorder %s36, %s52
      %p54 = scmp.eq.s32.totalorder %s14, 0
      %p55 = por %p53, %p54
      %s57 = sadd.s32 %s56, 1
      %p60 = scmp.eq.s32.totalorder %s8, 1
      %p61 = scmp.ne.s32.totalorder %s56, %s58
      %p62 = scmp.eq.s32.totalorder %s8, 0
      %p63 = por %p61, %p62
      %p64 = scmp.ne.s32.totalorder %s56, %s58
      %p65 = scmp.eq.s32.totalorder %s13, 1
      %p66 = por %p64, %p65
      %p67 = scmp.ne.s32.totalorder %s58, %s59
      %p68 = scmp.eq.s32.totalorder %s13, 0
      %p69 = por %p67, %p68
      %p70 = scmp.ne.s32.totalorder %s58, %s59
      %p71 = scmp.eq.s32.totalorder %s14, 1
      %p72 = por %p70, %p71
      %p74 = scmp.ne.s32.totalorder %s59, %s73
      %p75 = scmp.eq.s32.totalorder %s14, 0
      %p76 = por %p74, %p75
      %s77 = ssub.s32 %s15, %s27
      %s78 = ssub.s32 %s16, %s23
      %s79 = sor.u32 %s77, %s78
      %p80 = scmp.eq.s32.totalorder %s79, 0
      %s82 = sadd.s32 %s81, 1
      %s83 = scalar_select %p80, %s81, %s82
      %p86 = pneg %p80
      %p87 = scmp.eq.s32.totalorder %s8, 1
      %p88 = por %p86, %p87
      %p89 = scmp.ne.s32.totalorder %s81, %s84
      %p90 = scmp.eq.s32.totalorder %s8, 0
      %p91 = por %p89, %p90
      %p92 = scmp.ne.s32.totalorder %s81, %s84
      %p93 = scmp.eq.s32.totalorder %s13, 1
      %p94 = por %p92, %p93
      %p95 = scmp.ne.s32.totalorder %s84, %s85
      %p96 = scmp.eq.s32.totalorder %s13, 0
      %p97 = por %p95, %p96
      %p98 = scmp.ne.s32.totalorder %s84, %s85
      %p99 = scmp.eq.s32.totalorder %s14, 1
      %p100 = por %p98, %p99
      %p102 = scmp.ne.s32.totalorder %s85, %s101
      %p103 = scmp.eq.s32.totalorder %s14, 0
      %p104 = por %p102, %p103
      %p105 = scmp.le.s32.totalorder 1, %s8
      %p106 = scmp.lt.s32.totalorder %s8, 3
      %p107 = pnand %p105, %p106
      %p108 = pneg %p107
      // Predicated region
      $region9: #{tpu_custom_call.1} parent=5 // pred_check
        _
      $region10: #{tpu_custom_call.1} parent=5 // pred_check_branch
        %110 = sbr.rel (%p107) target = $region12
      $region11: #{tpu_custom_call.1} parent=5 // pred_region
        %s111 = ssub.s32 %s8, 1
        // Predicated region
        $region13: #{tpu_custom_call.1} parent=11 // pred_check
          %p112 = pneg %p69
        $region14: #{tpu_custom_call.1} parent=11 // pred_check_branch
          %114 = sbr.rel (%p112) target = $region16
        $region15: #{tpu_custom_call.1} parent=11 // pred_region
          _
        $region16: #{tpu_custom_call.1} parent=11 // pred_fallthru
          _
      $region12: #{tpu_custom_call.1} parent=5 // pred_fallthru
        _
      %p115 = scmp.lt.s32.totalorder %s8, 2
      // Predicated region
      $region17: #{tpu_custom_call.1} parent=5 // pred_check
        %p116 = pneg %p115
      $region18: #{tpu_custom_call.1} parent=5 // pred_check_branch
        %118 = sbr.rel (%p116) target = $region20
      $region19: #{tpu_custom_call.1} parent=5 // pred_region
        // Predicated region
        $region21: #{tpu_custom_call.1} parent=19 // pred_check
          %p119 = pneg %p42
        $region22: #{tpu_custom_call.1} parent=19 // pred_check_branch
          %121 = sbr.rel (%p119) target = $region24
        $region23: #{tpu_custom_call.1} parent=19 // pred_region
          %s122 = smul.u32 8, %s16
          %p123 = scmp.lt.s32.totalorder %s15, 1
          %s124 = scalar_select %p123, %s15, 1
          %p125 = scmp.lt.s32.totalorder %s122, 7
          %s126 = scalar_select %p125, %s122, 7
          %s127 = smul.addr %s124, 8
          %s128 = sadd.s32 %s126, %s127
          %s129 = smul.addr %s128, 8
          %s130 = scalar_lea.vmem %s0, %s129
          %s131 = smul.u32 8, %s16
        $region24: #{tpu_custom_call.1} parent=19 // pred_fallthru
          _
      $region20: #{tpu_custom_call.1} parent=5 // pred_fallthru
        _
      %p132 = scmp.le.s32.totalorder 1, %s8
      %p133 = scmp.lt.s32.totalorder %s8, 3
      %p134 = pnand %p132, %p133
      %p135 = pneg %p134
      // Predicated region
      $region25: #{tpu_custom_call.1} parent=5 // pred_check
        _
      $region26: #{tpu_custom_call.1} parent=5 // pred_check_branch
        %137 = sbr.rel (%p134) target = $region28
      $region27: #{tpu_custom_call.1} parent=5 // pred_region
        %s138 = ssub.s32 %s8, 1
        %s139 = smul.u32 8, %s18
        %p140 = scmp.lt.s32.totalorder %s17, 1
        %s141 = scalar_select %p140, %s17, 1
        %p142 = scmp.lt.s32.totalorder %s139, 7
        %s143 = scalar_select %p142, %s139, 7
        %s144 = smul.addr %s141, 8
        %s145 = sadd.s32 %s143, %s144
        %s146 = smul.addr %s145, 8
        %s147 = scalar_lea.vmem %s0, %s146
        %p148 = pneg %p48
        %p149 = pneg %p45
        %p150 = pneg %p69
        %p151 = pneg %p66
        %p152 = pneg %p97
        %p153 = pneg %p94
        %s154 = sand.u32 %s84, 1
        %s155 = sand.u32 %s84, 1
        %s156 = smul.addr %s155, 192
        %s157 = scalar_lea.vmem [#allocation2], %s156
        %s158 = smul.u32 8, %s18
        %p159 = scmp.lt.s32.totalorder %s17, 1
        %s160 = scalar_select %p159, %s17, 1
        %p161 = scmp.lt.s32.totalorder %s158, 7
        %s162 = scalar_select %p161, %s158, 7
        %s163 = smul.addr %s160, 8
        %s164 = sadd.s32 %s162, %s163
        %s165 = smul.addr %s164, 8
        %s166 = scalar_lea.vmem %s0, %s165
        %s167 = smul.u32 8, %s18
        %s168 = smul.u32 8, %s18
        %v169 = vld [vmem:[%s166] sm:$0xff]
        %v170 = vld [vmem:[%s166 + $0x8] sm:$0xff]
        %v171 = vld [vmem:[%s166 + $0x10] sm:$0xff]
        %v172 = vld [vmem:[%s166 + $0x18] sm:$0xff]
        %v173 = vld [vmem:[%s166 + $0x20] sm:$0xff]
        %v174 = vld [vmem:[%s166 + $0x28] sm:$0xff]
        %v175 = vld [vmem:[%s166 + $0x30] sm:$0xff]
        %v176 = vld [vmem:[%s166 + $0x38] sm:$0xff]
        %v177 = vld [vmem:[%s1] sm:$0x3]
        %vm178 = vcmask 15360
        %v180 = vsel %vm178, %v169, 0
        %v183 = vsel %vm178, %v170, 0
        %v186 = vsel %vm178, %v171, 0
        %v189 = vsel %vm178, %v172, 0
        %v192 = vsel %vm178, %v173, 0
        %v195 = vsel %vm178, %v174, 0
        %v198 = vsel %vm178, %v175, 0
        %v201 = vsel %vm178, %v176, 0
        %vm203 = vcmask 1041408
        %v205 = vsel %vm203, %v177, 0
        %207 = vmatprep.subr.mxu0 0.0
        %208 = vmatpush1.msra.mxu0 %v205
        %209 = vmatprep.subr.mxu0 0.0
        %210 = vmatpush1.msra.mxu0 0.0
        %211 = vmatprep.subr.mxu0 0.0
        %212 = vmatpush1.msra.mxu0 0.0
        %213 = vmatprep.subr.mxu0 0.0
        %214 = vmatpush1.msra.mxu0 0.0
        %215 = vmatprep.subr.mxu0 0.0
        %216 = vmatpush1.msra.mxu0 0.0
        %217 = vmatprep.subr.mxu0 0.0
        %218 = vmatpush1.msra.mxu0 0.0
        %219 = vmatprep.subr.mxu0 0.0
        %220 = vmatpush1.msra.mxu0 0.0
        %221 = vmatprep.subr.mxu0 0.0
        %222 = vmatpush1.msra.mxu0 0.0
        %223 = vmatprep.subr.mxu0 0.0
        %224 = vmatpush1.msra.mxu0 0.0
        %225 = vmatprep.subr.mxu0 0.0
        %226 = vmatpush1.msra.mxu0 0.0
        %227 = vmatprep.subr.mxu0 0.0
        %228 = vmatpush1.msra.mxu0 0.0
        %229 = vmatprep.subr.mxu0 0.0
        %230 = vmatpush1.msra.mxu0 0.0
        %231 = vmatprep.subr.mxu0 0.0
        %232 = vmatpush1.msra.mxu0 0.0
        %233 = vmatprep.subr.mxu0 0.0
        %234 = vmatpush1.msra.mxu0 0.0
        %235 = vmatprep.subr.mxu0 0.0
        %236 = vmatpush1.msra.mxu0 0.0
        %237 = vmatprep.subr.mxu0 0.0
        %238 = vmatpush1.msra.mxu0 0.0
        %239 = vmatprep.subr.mxu0 0.0
        %240 = vmatpush1.msra.mxu0 0.0
        %241 = vmatprep.subr.mxu0 0.0
        %242 = vmatpush1.msra.mxu0 0.0
        %243 = vmatprep.subr.mxu0 0.0
        %244 = vmatpush1.msra.mxu0 0.0
        %245 = vmatprep.subr.mxu0 0.0
        %246 = vmatpush1.msra.mxu0 0.0
        %247 = vmatprep.subr.mxu0 0.0
        %248 = vmatpush1.msra.mxu0 0.0
        %249 = vmatprep.subr.mxu0 0.0
        %250 = vmatpush1.msra.mxu0 0.0
        %251 = vmatprep.subr.mxu0 0.0
        %252 = vmatpush1.msra.mxu0 0.0
        %253 = vmatprep.subr.mxu0 0.0
        %254 = vmatpush1.msra.mxu0 0.0
        %255 = vmatprep.subr.mxu0 0.0
        %256 = vmatpush1.msra.mxu0 0.0
        %257 = vmatprep.subr.mxu0 0.0
        %258 = vmatpush1.msra.mxu0 0.0
        %259 = vmatprep.subr.mxu0 0.0
        %260 = vmatpush1.msra.mxu0 0.0
        %261 = vmatprep.subr.mxu0 0.0
        %262 = vmatpush1.msra.mxu0 0.0
        %263 = vmatprep.subr.mxu0 0.0
        %264 = vmatpush1.msra.mxu0 0.0
        %265 = vmatprep.subr.mxu0 0.0
        %266 = vmatpush1.msra.mxu0 0.0
        %267 = vmatprep.subr.mxu0 0.0
        %268 = vmatpush1.msra.mxu0 0.0
        %269 = vmatprep.subr.mxu0 0.0
        %270 = vmatpush1.msra.mxu0 0.0
        %271 = vmatprep.mubr.f32.mxu0 0.0
        %272 = vmatmul.mubr.f32.gmra.mrb[0].mxu0 %v180
        %v273 = vpop.f32.mrb[0].mxu0
        %v274 = vadd.f32 0.0, %v273
        %v275 = vpop.f32.mrb[0].mxu0
        %276 = vmatprep.mubr.f32.mxu0 0.0
        %277 = vmatmul.mubr.f32.gmra.mrb[0].mxu0 %v183
        %v278 = vpop.f32.mrb[0].mxu0
        %v279 = vadd.f32 0.0, %v278
        %v280 = vpop.f32.mrb[0].mxu0
        %281 = vmatprep.mubr.f32.mxu0 0.0
        %282 = vmatmul.mubr.f32.gmra.mrb[0].mxu0 %v186
        %v283 = vpop.f32.mrb[0].mxu0
        %v284 = vadd.f32 0.0, %v283
        %v285 = vpop.f32.mrb[0].mxu0
        %286 = vmatprep.mubr.f32.mxu0 0.0
        %287 = vmatmul.mubr.f32.gmra.mrb[0].mxu0 %v189
        %v288 = vpop.f32.mrb[0].mxu0
        %v289 = vadd.f32 0.0, %v288
        %v290 = vpop.f32.mrb[0].mxu0
        %291 = vmatprep.mubr.f32.mxu0 0.0
        %292 = vmatmul.mubr.f32.gmra.mrb[0].mxu0 %v192
        %v293 = vpop.f32.mrb[0].mxu0
        %v294 = vadd.f32 0.0, %v293
        %v295 = vpop.f32.mrb[0].mxu0
        %296 = vmatprep.mubr.f32.mxu0 0.0
        %297 = vmatmul.mubr.f32.gmra.mrb[0].mxu0 %v195
        %v298 = vpop.f32.mrb[0].mxu0
        %v299 = vadd.f32 0.0, %v298
        %v300 = vpop.f32.mrb[0].mxu0
        %301 = vmatprep.mubr.f32.mxu0 0.0
        %302 = vmatmul.mubr.f32.gmra.mrb[0].mxu0 %v198
        %v303 = vpop.f32.mrb[0].mxu0
        %v304 = vadd.f32 0.0, %v303
        %v305 = vpop.f32.mrb[0].mxu0
        %306 = vmatprep.mubr.f32.mxu0 0.0
        %307 = vmatmul.mubr.f32.gmra.mrb[0].mxu0 %v201
        %v308 = vpop.f32.mrb[0].mxu0
        %v309 = vadd.f32 0.0, %v308
        %v310 = vpop.f32.mrb[0].mxu0
        %311 = vdwg.mxu0
        %v312 = vand.u32 2147483647, %v274
        %vm313 = vcmp.le.f32.partialorder %v312, 0.7853982
        %vm314 = vcmp.lt.s32.totalorder %v274, 0
        %v315 = vand.u32 %v274, 2139095040
        %v316 = vshrl.u32 %v315, 23
        %v317 = vsub.s32 %v316, 127
        %v318 = vand.u32 2147483647, %v274
        %v319 = vand.u32 %v318, 8388607
        %v320 = vor.u32 %v319, 8388608
        %v321 = vsub.s32 0, %v320
        %v322 = vadd.s32 %v317, 1
        %vm323 = vcmp.gt.s32.totalorder %v322, 0
        %v324 = vsel %vm323, %v322, 0
        %v325 = vshrl.u32 %v324, 5
        %v326 = vand.u32 %v324, 31
        %v327 = vsub.s32 32, %v326
        %v328 = vshrl.u32 683565275, %v327
        %v329 = vshll.u32 683565275, %v326
        %v330 = vshrl.u32 2475754826, %v327
        %v331 = vor.u32 %v329, %v330
        %v332 = vshll.u32 2475754826, %v326
        %v333 = vshrl.u32 2131351028, %v327
        %v334 = vor.u32 %v332, %v333
        %v335 = vshll.u32 2131351028, %v326
        %v336 = vshrl.u32 2102212464, %v327
        %v337 = vor.u32 %v335, %v336
        %v338 = vshll.u32 2102212464, %v326
        %v339 = vshrl.u32 920167782, %v327
        %v340 = vor.u32 %v338, %v339
        %v341 = vshll.u32 920167782, %v326
        %v342 = vshrl.u32 1326507024, %v327
        %v343 = vor.u32 %v341, %v342
        %vm344 = vcmp.lt.s32.totalorder %v325, 1
        %vm345 = vcmp.lt.s32.totalorder %v325, 2
        %vm346 = vcmp.lt.s32.totalorder %v325, 3
        %vm347 = vcmp.lt.s32.totalorder %v325, 4
        %v348 = vsel %vm344, %v328, %v331
        %v349 = vsel %vm347, %v337, 2102212464
        %v350 = vsel %vm346, %v334, %v349
        %v351 = vsel %vm345, %v348, %v350
        %v352 = vsel %vm344, %v331, %v334
        %v353 = vsel %vm347, %v340, 920167782
        %v354 = vsel %vm346, %v337, %v353
        %v355 = vsel %vm345, %v352, %v354
        %v356 = vsel %vm344, %v334, %v337
        %v357 = vsel %vm347, %v343, 1326507024
        %v358 = vsel %vm346, %v340, %v357
        %v359 = vsel %vm345, %v356, %v358
        %v360 = vshll.u32 %v320, 8
        %v361 = vmul.u32.u64.compose %v360, %v359
        %v362 = vextract.low.u32 %v361
        %v363 = vextract.high.u32 %v361
        %v364 = vmul.u32.u64.compose %v360, %v355
        %v365 = vextract.low.u32 %v364
        %v366 = vextract.high.u32 %v364
        %v367 = vmul.u32 %v360, %v351
        %v368 = vadd.s32 %v363, %v365
        %vm369 = vc.u32 %v363, %v365
        %v370 = vadd.s32 %v366, 1
        %v371 = vsel %vm369, %v370, %v366
        %v372 = vadd.s32 %v367, %v371
        %v373 = vadd.s32 %v372, 536870912
        %v374 = vshrl.u32 %v373, 30
        %v375 = vshll.u32 %v374, 30
        %v376 = vsub.s32 %v372, %v375
        %vm377 = vcmp.lt.s32.totalorder %v376, 0
        %v378 = vsub.s32 0, %v376
        %v379 = vsel %vm377, %v378, %v376
        %v380 = vclz %v379
        %v381 = vsub.s32 %v380, 2
        %vm382 = vcmp.gt.s32.totalorder 0, %v381
        %v383 = vsel %vm382, 0, %v381
        %v384 = vsub.s32 32, %v383
        %v385 = vshll.u32 %v376, %v383
        %v386 = vshrl.u32 %v368, %v384
        %v387 = vor.u32 %v385, %v386
        %v388 = vsub.s32 4294967266, %v383
        %v389 = vadd.s32 %v388, 127
        %v390 = vshll.u32 %v389, 23
        %v391 = vor.u32 4788187, %v390
        %v392 = vand.u32 2147483647, %v391
        %v394 = vcvt.s32.f32 %v387
        %v395 = vmul.f32 %v394, %v392
        %v396 = vxor.u32 %v395, 2147483648
        %v397 = vsel %vm314, %v396, %v395
        %v398 = vsub.s32 4, %v374
        %v399 = vsel %vm314, %v398, %v374
        %v400 = vsel %vm313, %v274, %v397
        %v401 = vsel %vm313, 0, %v399
        %v402 = vcosq.f32.pop %v400
        %v403 = vsinq.f32.pop %v400
        %vm404 = vweird.f32 %v274
        %v405 = vadd.s32 %v401, 3
        %v406 = vand.u32 %v405, 3
        %vm407 = vcmp.lt.s32.totalorder %v406, 2
        %vm408 = vcmp.eq.s32.totalorder %v406, 0
        %v409 = vxor.u32 %v403, 2147483648
        %v410 = vsel %vm408, %v402, %v409
        %vm411 = vcmp.eq.s32.totalorder %v406, 2
        %v412 = vxor.u32 %v402, 2147483648
        %v413 = vsel %vm411, %v412, %v403
        %v414 = vsel %vm407, %v410, %v413
        %v415 = vsel %vm404, nan, %v414
        %v416 = vand.u32 2147483647, %v279
        %vm417 = vcmp.le.f32.partialorder %v416, 0.7853982
        %vm418 = vcmp.lt.s32.totalorder %v279, 0
        %v419 = vand.u32 %v279, 2139095040
        %v420 = vshrl.u32 %v419, 23
        %v421 = vsub.s32 %v420, 127
        %v422 = vand.u32 2147483647, %v279
        %v423 = vand.u32 %v422, 8388607
        %v424 = vor.u32 %v423, 8388608
        %v425 = vsub.s32 0, %v424
        %v426 = vadd.s32 %v421, 1
        %vm427 = vcmp.gt.s32.totalorder %v426, 0
        %v428 = vsel %vm427, %v426, 0
        %v429 = vshrl.u32 %v428, 5
        %v430 = vand.u32 %v428, 31
        %v431 = vsub.s32 32, %v430
        %v432 = vshrl.u32 683565275, %v431
        %v433 = vshll.u32 683565275, %v430
        %v434 = vshrl.u32 2475754826, %v431
        %v435 = vor.u32 %v433, %v434
        %v436 = vshll.u32 2475754826, %v430
        %v437 = vshrl.u32 2131351028, %v431
        %v438 = vor.u32 %v436, %v437
        %v439 = vshll.u32 2131351028, %v430
        %v440 = vshrl.u32 2102212464, %v431
        %v441 = vor.u32 %v439, %v440
        %v442 = vshll.u32 2102212464, %v430
        %v443 = vshrl.u32 920167782, %v431
        %v444 = vor.u32 %v442, %v443
        %v445 = vshll.u32 920167782, %v430
        %v446 = vshrl.u32 1326507024, %v431
        %v447 = vor.u32 %v445, %v446
        %vm448 = vcmp.lt.s32.totalorder %v429, 1
        %vm449 = vcmp.lt.s32.totalorder %v429, 2
        %vm450 = vcmp.lt.s32.totalorder %v429, 3
        %vm451 = vcmp.lt.s32.totalorder %v429, 4
        %v452 = vsel %vm448, %v432, %v435
        %v453 = vsel %vm451, %v441, 2102212464
        %v454 = vsel %vm450, %v438, %v453
        %v455 = vsel %vm449, %v452, %v454
        %v456 = vsel %vm448, %v435, %v438
        %v457 = vsel %vm451, %v444, 920167782
        %v458 = vsel %vm450, %v441, %v457
        %v459 = vsel %vm449, %v456, %v458
        %v460 = vsel %vm448, %v438, %v441
        %v461 = vsel %vm451, %v447, 1326507024
        %v462 = vsel %vm450, %v444, %v461
        %v463 = vsel %vm449, %v460, %v462
        %v464 = vshll.u32 %v424, 8
        %v465 = vmul.u32.u64.compose %v464, %v463
        %v466 = vextract.low.u32 %v465
        %v467 = vextract.high.u32 %v465
        %v468 = vmul.u32.u64.compose %v464, %v459
        %v469 = vextract.low.u32 %v468
        %v470 = vextract.high.u32 %v468
        %v471 = vmul.u32 %v464, %v455
        %v472 = vadd.s32 %v467, %v469
        %vm473 = vc.u32 %v467, %v469
        %v474 = vadd.s32 %v470, 1
        %v475 = vsel %vm473, %v474, %v470
        %v476 = vadd.s32 %v471, %v475
        %v477 = vadd.s32 %v476, 536870912
        %v478 = vshrl.u32 %v477, 30
        %v479 = vshll.u32 %v478, 30
        %v480 = vsub.s32 %v476, %v479
        %vm481 = vcmp.lt.s32.totalorder %v480, 0
        %v482 = vsub.s32 0, %v480
        %v483 = vsel %vm481, %v482, %v480
        %v484 = vclz %v483
        %v485 = vsub.s32 %v484, 2
        %vm486 = vcmp.gt.s32.totalorder 0, %v485
        %v487 = vsel %vm486, 0, %v485
        %v488 = vsub.s32 32, %v487
        %v489 = vshll.u32 %v480, %v487
        %v490 = vshrl.u32 %v472, %v488
        %v491 = vor.u32 %v489, %v490
        %v492 = vsub.s32 4294967266, %v487
        %v493 = vadd.s32 %v492, 127
        %v494 = vshll.u32 %v493, 23
        %v495 = vor.u32 4788187, %v494
        %v496 = vand.u32 2147483647, %v495
        %v498 = vcvt.s32.f32 %v491
        %v499 = vmul.f32 %v498, %v496
        %v500 = vxor.u32 %v499, 2147483648
        %v501 = vsel %vm418, %v500, %v499
        %v502 = vsub.s32 4, %v478
        %v503 = vsel %vm418, %v502, %v478
        %v504 = vsel %vm417, %v279, %v501
        %v505 = vsel %vm417, 0, %v503
        %v506 = vcosq.f32.pop %v504
        %v507 = vsinq.f32.pop %v504
        %vm508 = vweird.f32 %v279
        %v509 = vadd.s32 %v505, 3
        %v510 = vand.u32 %v509, 3
        %vm511 = vcmp.lt.s32.totalorder %v510, 2
        %vm512 = vcmp.eq.s32.totalorder %v510, 0
        %v513 = vxor.u32 %v507, 2147483648
        %v514 = vsel %vm512, %v506, %v513
        %vm515 = vcmp.eq.s32.totalorder %v510, 2
        %v516 = vxor.u32 %v506, 2147483648
        %v517 = vsel %vm515, %v516, %v507
        %v518 = vsel %vm511, %v514, %v517
        %v519 = vsel %vm508, nan, %v518
        %v520 = vand.u32 2147483647, %v284
        %vm521 = vcmp.le.f32.partialorder %v520, 0.7853982
        %vm522 = vcmp.lt.s32.totalorder %v284, 0
        %v523 = vand.u32 %v284, 2139095040
        %v524 = vshrl.u32 %v523, 23
        %v525 = vsub.s32 %v524, 127
        %v526 = vand.u32 2147483647, %v284
        %v527 = vand.u32 %v526, 8388607
        %v528 = vor.u32 %v527, 8388608
        %v529 = vsub.s32 0, %v528
        %v530 = vadd.s32 %v525, 1
        %vm531 = vcmp.gt.s32.totalorder %v530, 0
        %v532 = vsel %vm531, %v530, 0
        %v533 = vshrl.u32 %v532, 5
        %v534 = vand.u32 %v532, 31
        %v535 = vsub.s32 32, %v534
        %v536 = vshrl.u32 683565275, %v535
        %v537 = vshll.u32 683565275, %v534
        %v538 = vshrl.u32 2475754826, %v535
        %v539 = vor.u32 %v537, %v538
        %v540 = vshll.u32 2475754826, %v534
        %v541 = vshrl.u32 2131351028, %v535
        %v542 = vor.u32 %v540, %v541
        %v543 = vshll.u32 2131351028, %v534
        %v544 = vshrl.u32 2102212464, %v535
        %v545 = vor.u32 %v543, %v544
        %v546 = vshll.u32 2102212464, %v534
        %v547 = vshrl.u32 920167782, %v535
        %v548 = vor.u32 %v546, %v547
        %v549 = vshll.u32 920167782, %v534
        %v550 = vshrl.u32 1326507024, %v535
        %v551 = vor.u32 %v549, %v550
        %vm552 = vcmp.lt.s32.totalorder %v533, 1
        %vm553 = vcmp.lt.s32.totalorder %v533, 2
        %vm554 = vcmp.lt.s32.totalorder %v533, 3
        %vm555 = vcmp.lt.s32.totalorder %v533, 4
        %v556 = vsel %vm552, %v536, %v539
        %v557 = vsel %vm555, %v545, 2102212464
        %v558 = vsel %vm554, %v542, %v557
        %v559 = vsel %vm553, %v556, %v558
        %v560 = vsel %vm552, %v539, %v542
        %v561 = vsel %vm555, %v548, 920167782
        %v562 = vsel %vm554, %v545, %v561
        %v563 = vsel %vm553, %v560, %v562
        %v564 = vsel %vm552, %v542, %v545
        %v565 = vsel %vm555, %v551, 1326507024
        %v566 = vsel %vm554, %v548, %v565
        %v567 = vsel %vm553, %v564, %v566
        %v568 = vshll.u32 %v528, 8
        %v569 = vmul.u32.u64.compose %v568, %v567
        %v570 = vextract.low.u32 %v569
        %v571 = vextract.high.u32 %v569
        %v572 = vmul.u32.u64.compose %v568, %v563
        %v573 = vextract.low.u32 %v572
        %v574 = vextract.high.u32 %v572
        %v575 = vmul.u32 %v568, %v559
        %v576 = vadd.s32 %v571, %v573
        %vm577 = vc.u32 %v571, %v573
        %v578 = vadd.s32 %v574, 1
        %v579 = vsel %vm577, %v578, %v574
        %v580 = vadd.s32 %v575, %v579
        %v581 = vadd.s32 %v580, 536870912
        %v582 = vshrl.u32 %v581, 30
        %v583 = vshll.u32 %v582, 30
        %v584 = vsub.s32 %v580, %v583
        %vm585 = vcmp.lt.s32.totalorder %v584, 0
        %v586 = vsub.s32 0, %v584
        %v587 = vsel %vm585, %v586, %v584
        %v588 = vclz %v587
        %v589 = vsub.s32 %v588, 2
        %vm590 = vcmp.gt.s32.totalorder 0, %v589
        %v591 = vsel %vm590, 0, %v589
        %v592 = vsub.s32 32, %v591
        %v593 = vshll.u32 %v584, %v591
        %v594 = vshrl.u32 %v576, %v592
        %v595 = vor.u32 %v593, %v594
        %v596 = vsub.s32 4294967266, %v591
        %v597 = vadd.s32 %v596, 127
        %v598 = vshll.u32 %v597, 23
        %v599 = vor.u32 4788187, %v598
        %v600 = vand.u32 2147483647, %v599
        %v602 = vcvt.s32.f32 %v595
        %v603 = vmul.f32 %v602, %v600
        %v604 = vxor.u32 %v603, 2147483648
        %v605 = vsel %vm522, %v604, %v603
        %v606 = vsub.s32 4, %v582
        %v607 = vsel %vm522, %v606, %v582
        %v608 = vsel %vm521, %v284, %v605
        %v609 = vsel %vm521, 0, %v607
        %v610 = vcosq.f32.pop %v608
        %v611 = vsinq.f32.pop %v608
        %vm612 = vweird.f32 %v284
        %v613 = vadd.s32 %v609, 3
        %v614 = vand.u32 %v613, 3
        %vm615 = vcmp.lt.s32.totalorder %v614, 2
        %vm616 = vcmp.eq.s32.totalorder %v614, 0
        %v617 = vxor.u32 %v611, 2147483648
        %v618 = vsel %vm616, %v610, %v617
        %vm619 = vcmp.eq.s32.totalorder %v614, 2
        %v620 = vxor.u32 %v610, 2147483648
        %v621 = vsel %vm619, %v620, %v611
        %v622 = vsel %vm615, %v618, %v621
        %v623 = vsel %vm612, nan, %v622
        %v624 = vand.u32 2147483647, %v289
        %vm625 = vcmp.le.f32.partialorder %v624, 0.7853982
        %vm626 = vcmp.lt.s32.totalorder %v289, 0
        %v627 = vand.u32 %v289, 2139095040
        %v628 = vshrl.u32 %v627, 23
        %v629 = vsub.s32 %v628, 127
        %v630 = vand.u32 2147483647, %v289
        %v631 = vand.u32 %v630, 8388607
        %v632 = vor.u32 %v631, 8388608
        %v633 = vsub.s32 0, %v632
        %v634 = vadd.s32 %v629, 1
        %vm635 = vcmp.gt.s32.totalorder %v634, 0
        %v636 = vsel %vm635, %v634, 0
        %v637 = vshrl.u32 %v636, 5
        %v638 = vand.u32 %v636, 31
        %v639 = vsub.s32 32, %v638
        %v640 = vshrl.u32 683565275, %v639
        %v641 = vshll.u32 683565275, %v638
        %v642 = vshrl.u32 2475754826, %v639
        %v643 = vor.u32 %v641, %v642
        %v644 = vshll.u32 2475754826, %v638
        %v645 = vshrl.u32 2131351028, %v639
        %v646 = vor.u32 %v644, %v645
        %v647 = vshll.u32 2131351028, %v638
        %v648 = vshrl.u32 2102212464, %v639
        %v649 = vor.u32 %v647, %v648
        %v650 = vshll.u32 2102212464, %v638
        %v651 = vshrl.u32 920167782, %v639
        %v652 = vor.u32 %v650, %v651
        %v653 = vshll.u32 920167782, %v638
        %v654 = vshrl.u32 1326507024, %v639
        %v655 = vor.u32 %v653, %v654
        %vm656 = vcmp.lt.s32.totalorder %v637, 1
        %vm657 = vcmp.lt.s32.totalorder %v637, 2
        %vm658 = vcmp.lt.s32.totalorder %v637, 3
        %vm659 = vcmp.lt.s32.totalorder %v637, 4
        %v660 = vsel %vm656, %v640, %v643
        %v661 = vsel %vm659, %v649, 2102212464
        %v662 = vsel %vm658, %v646, %v661
        %v663 = vsel %vm657, %v660, %v662
        %v664 = vsel %vm656, %v643, %v646
        %v665 = vsel %vm659, %v652, 920167782
        %v666 = vsel %vm658, %v649, %v665
        %v667 = vsel %vm657, %v664, %v666
        %v668 = vsel %vm656, %v646, %v649
        %v669 = vsel %vm659, %v655, 1326507024
        %v670 = vsel %vm658, %v652, %v669
        %v671 = vsel %vm657, %v668, %v670
        %v672 = vshll.u32 %v632, 8
        %v673 = vmul.u32.u64.compose %v672, %v671
        %v674 = vextract.low.u32 %v673
        %v675 = vextract.high.u32 %v673
        %v676 = vmul.u32.u64.compose %v672, %v667
        %v677 = vextract.low.u32 %v676
        %v678 = vextract.high.u32 %v676
        %v679 = vmul.u32 %v672, %v663
        %v680 = vadd.s32 %v675, %v677
        %vm681 = vc.u32 %v675, %v677
        %v682 = vadd.s32 %v678, 1
        %v683 = vsel %vm681, %v682, %v678
        %v684 = vadd.s32 %v679, %v683
        %v685 = vadd.s32 %v684, 536870912
        %v686 = vshrl.u32 %v685, 30
        %v687 = vshll.u32 %v686, 30
        %v688 = vsub.s32 %v684, %v687
        %vm689 = vcmp.lt.s32.totalorder %v688, 0
        %v690 = vsub.s32 0, %v688
        %v691 = vsel %vm689, %v690, %v688
        %v692 = vclz %v691
        %v693 = vsub.s32 %v692, 2
        %vm694 = vcmp.gt.s32.totalorder 0, %v693
        %v695 = vsel %vm694, 0, %v693
        %v696 = vsub.s32 32, %v695
        %v697 = vshll.u32 %v688, %v695
        %v698 = vshrl.u32 %v680, %v696
        %v699 = vor.u32 %v697, %v698
        %v700 = vsub.s32 4294967266, %v695
        %v701 = vadd.s32 %v700, 127
        %v702 = vshll.u32 %v701, 23
        %v703 = vor.u32 4788187, %v702
        %v704 = vand.u32 2147483647, %v703
        %v706 = vcvt.s32.f32 %v699
        %v707 = vmul.f32 %v706, %v704
        %v708 = vxor.u32 %v707, 2147483648
        %v709 = vsel %vm626, %v708, %v707
        %v710 = vsub.s32 4, %v686
        %v711 = vsel %vm626, %v710, %v686
        %v712 = vsel %vm625, %v289, %v709
        %v713 = vsel %vm625, 0, %v711
        %v714 = vcosq.f32.pop %v712
        %v715 = vsinq.f32.pop %v712
        %vm716 = vweird.f32 %v289
        %v717 = vadd.s32 %v713, 3
        %v718 = vand.u32 %v717, 3
        %vm719 = vcmp.lt.s32.totalorder %v718, 2
        %vm720 = vcmp.eq.s32.totalorder %v718, 0
        %v721 = vxor.u32 %v715, 2147483648
        %v722 = vsel %vm720, %v714, %v721
        %vm723 = vcmp.eq.s32.totalorder %v718, 2
        %v724 = vxor.u32 %v714, 2147483648
        %v725 = vsel %vm723, %v724, %v715
        %v726 = vsel %vm719, %v722, %v725
        %v727 = vsel %vm716, nan, %v726
        %v728 = vand.u32 2147483647, %v294
        %vm729 = vcmp.le.f32.partialorder %v728, 0.7853982
        %vm730 = vcmp.lt.s32.totalorder %v294, 0
        %v731 = vand.u32 %v294, 2139095040
        %v732 = vshrl.u32 %v731, 23
        %v733 = vsub.s32 %v732, 127
        %v734 = vand.u32 2147483647, %v294
        %v735 = vand.u32 %v734, 8388607
        %v736 = vor.u32 %v735, 8388608
        %v737 = vsub.s32 0, %v736
        %v738 = vadd.s32 %v733, 1
        %vm739 = vcmp.gt.s32.totalorder %v738, 0
        %v740 = vsel %vm739, %v738, 0
        %v741 = vshrl.u32 %v740, 5
        %v742 = vand.u32 %v740, 31
        %v743 = vsub.s32 32, %v742
        %v744 = vshrl.u32 683565275, %v743
        %v745 = vshll.u32 683565275, %v742
        %v746 = vshrl.u32 2475754826, %v743
        %v747 = vor.u32 %v745, %v746
        %v748 = vshll.u32 2475754826, %v742
        %v749 = vshrl.u32 2131351028, %v743
        %v750 = vor.u32 %v748, %v749
        %v751 = vshll.u32 2131351028, %v742
        %v752 = vshrl.u32 2102212464, %v743
        %v753 = vor.u32 %v751, %v752
        %v754 = vshll.u32 2102212464, %v742
        %v755 = vshrl.u32 920167782, %v743
        %v756 = vor.u32 %v754, %v755
        %v757 = vshll.u32 920167782, %v742
        %v758 = vshrl.u32 1326507024, %v743
        %v759 = vor.u32 %v757, %v758
        %vm760 = vcmp.lt.s32.totalorder %v741, 1
        %vm761 = vcmp.lt.s32.totalorder %v741, 2
        %vm762 = vcmp.lt.s32.totalorder %v741, 3
        %vm763 = vcmp.lt.s32.totalorder %v741, 4
        %v764 = vsel %vm760, %v744, %v747
        %v765 = vsel %vm763, %v753, 2102212464
        %v766 = vsel %vm762, %v750, %v765
        %v767 = vsel %vm761, %v764, %v766
        %v768 = vsel %vm760, %v747, %v750
        %v769 = vsel %vm763, %v756, 920167782
        %v770 = vsel %vm762, %v753, %v769
        %v771 = vsel %vm761, %v768, %v770
        %v772 = vsel %vm760, %v750, %v753
        %v773 = vsel %vm763, %v759, 1326507024
        %v774 = vsel %vm762, %v756, %v773
        %v775 = vsel %vm761, %v772, %v774
        %v776 = vshll.u32 %v736, 8
        %v777 = vmul.u32.u64.compose %v776, %v775
        %v778 = vextract.low.u32 %v777
        %v779 = vextract.high.u32 %v777
        %v780 = vmul.u32.u64.compose %v776, %v771
        %v781 = vextract.low.u32 %v780
        %v782 = vextract.high.u32 %v780
        %v783 = vmul.u32 %v776, %v767
        %v784 = vadd.s32 %v779, %v781
        %vm785 = vc.u32 %v779, %v781
        %v786 = vadd.s32 %v782, 1
        %v787 = vsel %vm785, %v786, %v782
        %v788 = vadd.s32 %v783, %v787
        %v789 = vadd.s32 %v788, 536870912
        %v790 = vshrl.u32 %v789, 30
        %v791 = vshll.u32 %v790, 30
        %v792 = vsub.s32 %v788, %v791
        %vm793 = vcmp.lt.s32.totalorder %v792, 0
        %v794 = vsub.s32 0, %v792
        %v795 = vsel %vm793, %v794, %v792
        %v796 = vclz %v795
        %v797 = vsub.s32 %v796, 2
        %vm798 = vcmp.gt.s32.totalorder 0, %v797
        %v799 = vsel %vm798, 0, %v797
        %v800 = vsub.s32 32, %v799
        %v801 = vshll.u32 %v792, %v799
        %v802 = vshrl.u32 %v784, %v800
        %v803 = vor.u32 %v801, %v802
        %v804 = vsub.s32 4294967266, %v799
        %v805 = vadd.s32 %v804, 127
        %v806 = vshll.u32 %v805, 23
        %v807 = vor.u32 4788187, %v806
        %v808 = vand.u32 2147483647, %v807
        %v810 = vcvt.s32.f32 %v803
        %v811 = vmul.f32 %v810, %v808
        %v812 = vxor.u32 %v811, 2147483648
        %v813 = vsel %vm730, %v812, %v811
        %v814 = vsub.s32 4, %v790
        %v815 = vsel %vm730, %v814, %v790
        %v816 = vsel %vm729, %v294, %v813
        %v817 = vsel %vm729, 0, %v815
        %v818 = vcosq.f32.pop %v816
        %v819 = vsinq.f32.pop %v816
        %vm820 = vweird.f32 %v294
        %v821 = vadd.s32 %v817, 3
        %v822 = vand.u32 %v821, 3
        %vm823 = vcmp.lt.s32.totalorder %v822, 2
        %vm824 = vcmp.eq.s32.totalorder %v822, 0
        %v825 = vxor.u32 %v819, 2147483648
        %v826 = vsel %vm824, %v818, %v825
        %vm827 = vcmp.eq.s32.totalorder %v822, 2
        %v828 = vxor.u32 %v818, 2147483648
        %v829 = vsel %vm827, %v828, %v819
        %v830 = vsel %vm823, %v826, %v829
        %v831 = vsel %vm820, nan, %v830
        %v832 = vand.u32 2147483647, %v299
        %vm833 = vcmp.le.f32.partialorder %v832, 0.7853982
        %vm834 = vcmp.lt.s32.totalorder %v299, 0
        %v835 = vand.u32 %v299, 2139095040
        %v836 = vshrl.u32 %v835, 23
        %v837 = vsub.s32 %v836, 127
        %v838 = vand.u32 2147483647, %v299
        %v839 = vand.u32 %v838, 8388607
        %v840 = vor.u32 %v839, 8388608
        %v841 = vsub.s32 0, %v840
        %v842 = vadd.s32 %v837, 1
        %vm843 = vcmp.gt.s32.totalorder %v842, 0
        %v844 = vsel %vm843, %v842, 0
        %v845 = vshrl.u32 %v844, 5
        %v846 = vand.u32 %v844, 31
        %v847 = vsub.s32 32, %v846
        %v848 = vshrl.u32 683565275, %v847
        %v849 = vshll.u32 683565275, %v846
        %v850 = vshrl.u32 2475754826, %v847
        %v851 = vor.u32 %v849, %v850
        %v852 = vshll.u32 2475754826, %v846
        %v853 = vshrl.u32 2131351028, %v847
        %v854 = vor.u32 %v852, %v853
        %v855 = vshll.u32 2131351028, %v846
        %v856 = vshrl.u32 2102212464, %v847
        %v857 = vor.u32 %v855, %v856
        %v858 = vshll.u32 2102212464, %v846
        %v859 = vshrl.u32 920167782, %v847
        %v860 = vor.u32 %v858, %v859
        %v861 = vshll.u32 920167782, %v846
        %v862 = vshrl.u32 1326507024, %v847
        %v863 = vor.u32 %v861, %v862
        %vm864 = vcmp.lt.s32.totalorder %v845, 1
        %vm865 = vcmp.lt.s32.totalorder %v845, 2
        %vm866 = vcmp.lt.s32.totalorder %v845, 3
        %vm867 = vcmp.lt.s32.totalorder %v845, 4
        %v868 = vsel %vm864, %v848, %v851
        %v869 = vsel %vm867, %v857, 2102212464
        %v870 = vsel %vm866, %v854, %v869
        %v871 = vsel %vm865, %v868, %v870
        %v872 = vsel %vm864, %v851, %v854
        %v873 = vsel %vm867, %v860, 920167782
        %v874 = vsel %vm866, %v857, %v873
        %v875 = vsel %vm865, %v872, %v874
        %v876 = vsel %vm864, %v854, %v857
        %v877 = vsel %vm867, %v863, 1326507024
        %v878 = vsel %vm866, %v860, %v877
        %v879 = vsel %vm865, %v876, %v878
        %v880 = vshll.u32 %v840, 8
        %v881 = vmul.u32.u64.compose %v880, %v879
        %v882 = vextract.low.u32 %v881
        %v883 = vextract.high.u32 %v881
        %v884 = vmul.u32.u64.compose %v880, %v875
        %v885 = vextract.low.u32 %v884
        %v886 = vextract.high.u32 %v884
        %v887 = vmul.u32 %v880, %v871
        %v888 = vadd.s32 %v883, %v885
        %vm889 = vc.u32 %v883, %v885
        %v890 = vadd.s32 %v886, 1
        %v891 = vsel %vm889, %v890, %v886
        %v892 = vadd.s32 %v887, %v891
        %v893 = vadd.s32 %v892, 536870912
        %v894 = vshrl.u32 %v893, 30
        %v895 = vshll.u32 %v894, 30
        %v896 = vsub.s32 %v892, %v895
        %vm897 = vcmp.lt.s32.totalorder %v896, 0
        %v898 = vsub.s32 0, %v896
        %v899 = vsel %vm897, %v898, %v896
        %v900 = vclz %v899
        %v901 = vsub.s32 %v900, 2
        %vm902 = vcmp.gt.s32.totalorder 0, %v901
        %v903 = vsel %vm902, 0, %v901
        %v904 = vsub.s32 32, %v903
        %v905 = vshll.u32 %v896, %v903
        %v906 = vshrl.u32 %v888, %v904
        %v907 = vor.u32 %v905, %v906
        %v908 = vsub.s32 4294967266, %v903
        %v909 = vadd.s32 %v908, 127
        %v910 = vshll.u32 %v909, 23
        %v911 = vor.u32 4788187, %v910
        %v912 = vand.u32 2147483647, %v911
        %v914 = vcvt.s32.f32 %v907
        %v915 = vmul.f32 %v914, %v912
        %v916 = vxor.u32 %v915, 2147483648
        %v917 = vsel %vm834, %v916, %v915
        %v918 = vsub.s32 4, %v894
        %v919 = vsel %vm834, %v918, %v894
        %v920 = vsel %vm833, %v299, %v917
        %v921 = vsel %vm833, 0, %v919
        %v922 = vcosq.f32.pop %v920
        %v923 = vsinq.f32.pop %v920
        %vm924 = vweird.f32 %v299
        %v925 = vadd.s32 %v921, 3
        %v926 = vand.u32 %v925, 3
        %vm927 = vcmp.lt.s32.totalorder %v926, 2
        %vm928 = vcmp.eq.s32.totalorder %v926, 0
        %v929 = vxor.u32 %v923, 2147483648
        %v930 = vsel %vm928, %v922, %v929
        %vm931 = vcmp.eq.s32.totalorder %v926, 2
        %v932 = vxor.u32 %v922, 2147483648
        %v933 = vsel %vm931, %v932, %v923
        %v934 = vsel %vm927, %v930, %v933
        %v935 = vsel %vm924, nan, %v934
        %v936 = vand.u32 2147483647, %v304
        %vm937 = vcmp.le.f32.partialorder %v936, 0.7853982
        %vm938 = vcmp.lt.s32.totalorder %v304, 0
        %v939 = vand.u32 %v304, 2139095040
        %v940 = vshrl.u32 %v939, 23
        %v941 = vsub.s32 %v940, 127
        %v942 = vand.u32 2147483647, %v304
        %v943 = vand.u32 %v942, 8388607
        %v944 = vor.u32 %v943, 8388608
        %v945 = vsub.s32 0, %v944
        %v946 = vadd.s32 %v941, 1
        %vm947 = vcmp.gt.s32.totalorder %v946, 0
        %v948 = vsel %vm947, %v946, 0
        %v949 = vshrl.u32 %v948, 5
        %v950 = vand.u32 %v948, 31
        %v951 = vsub.s32 32, %v950
        %v952 = vshrl.u32 683565275, %v951
        %v953 = vshll.u32 683565275, %v950
        %v954 = vshrl.u32 2475754826, %v951
        %v955 = vor.u32 %v953, %v954
        %v956 = vshll.u32 2475754826, %v950
        %v957 = vshrl.u32 2131351028, %v951
        %v958 = vor.u32 %v956, %v957
        %v959 = vshll.u32 2131351028, %v950
        %v960 = vshrl.u32 2102212464, %v951
        %v961 = vor.u32 %v959, %v960
        %v962 = vshll.u32 2102212464, %v950
        %v963 = vshrl.u32 920167782, %v951
        %v964 = vor.u32 %v962, %v963
        %v965 = vshll.u32 920167782, %v950
        %v966 = vshrl.u32 1326507024, %v951
        %v967 = vor.u32 %v965, %v966
        %vm968 = vcmp.lt.s32.totalorder %v949, 1
        %vm969 = vcmp.lt.s32.totalorder %v949, 2
        %vm970 = vcmp.lt.s32.totalorder %v949, 3
        %vm971 = vcmp.lt.s32.totalorder %v949, 4
        %v972 = vsel %vm968, %v952, %v955
        %v973 = vsel %vm971, %v961, 2102212464
        %v974 = vsel %vm970, %v958, %v973
        %v975 = vsel %vm969, %v972, %v974
        %v976 = vsel %vm968, %v955, %v958
        %v977 = vsel %vm971, %v964, 920167782
        %v978 = vsel %vm970, %v961, %v977
        %v979 = vsel %vm969, %v976, %v978
        %v980 = vsel %vm968, %v958, %v961
        %v981 = vsel %vm971, %v967, 1326507024
        %v982 = vsel %vm970, %v964, %v981
        %v983 = vsel %vm969, %v980, %v982
        %v984 = vshll.u32 %v944, 8
        %v985 = vmul.u32.u64.compose %v984, %v983
        %v986 = vextract.low.u32 %v985
        %v987 = vextract.high.u32 %v985
        %v988 = vmul.u32.u64.compose %v984, %v979
        %v989 = vextract.low.u32 %v988
        %v990 = vextract.high.u32 %v988
        %v991 = vmul.u32 %v984, %v975
        %v992 = vadd.s32 %v987, %v989
        %vm993 = vc.u32 %v987, %v989
        %v994 = vadd.s32 %v990, 1
        %v995 = vsel %vm993, %v994, %v990
        %v996 = vadd.s32 %v991, %v995
        %v997 = vadd.s32 %v996, 536870912
        %v998 = vshrl.u32 %v997, 30
        %v999 = vshll.u32 %v998, 30
        %v1000 = vsub.s32 %v996, %v999
        %vm1001 = vcmp.lt.s32.totalorder %v1000, 0
        %v1002 = vsub.s32 0, %v1000
        %v1003 = vsel %vm1001, %v1002, %v1000
        %v1004 = vclz %v1003
        %v1005 = vsub.s32 %v1004, 2
        %vm1006 = vcmp.gt.s32.totalorder 0, %v1005
        %v1007 = vsel %vm1006, 0, %v1005
        %v1008 = vsub.s32 32, %v1007
        %v1009 = vshll.u32 %v1000, %v1007
        %v1010 = vshrl.u32 %v992, %v1008
        %v1011 = vor.u32 %v1009, %v1010
        %v1012 = vsub.s32 4294967266, %v1007
        %v1013 = vadd.s32 %v1012, 127
        %v1014 = vshll.u32 %v1013, 23
        %v1015 = vor.u32 4788187, %v1014
        %v1016 = vand.u32 2147483647, %v1015
        %v1018 = vcvt.s32.f32 %v1011
        %v1019 = vmul.f32 %v1018, %v1016
        %v1020 = vxor.u32 %v1019, 2147483648
        %v1021 = vsel %vm938, %v1020, %v1019
        %v1022 = vsub.s32 4, %v998
        %v1023 = vsel %vm938, %v1022, %v998
        %v1024 = vsel %vm937, %v304, %v1021
        %v1025 = vsel %vm937, 0, %v1023
        %v1026 = vcosq.f32.pop %v1024
        %v1027 = vsinq.f32.pop %v1024
        %vm1028 = vweird.f32 %v304
        %v1029 = vadd.s32 %v1025, 3
        %v1030 = vand.u32 %v1029, 3
        %vm1031 = vcmp.lt.s32.totalorder %v1030, 2
        %vm1032 = vcmp.eq.s32.totalorder %v1030, 0
        %v1033 = vxor.u32 %v1027, 2147483648
        %v1034 = vsel %vm1032, %v1026, %v1033
        %vm1035 = vcmp.eq.s32.totalorder %v1030, 2
        %v1036 = vxor.u32 %v1026, 2147483648
        %v1037 = vsel %vm1035, %v1036, %v1027
        %v1038 = vsel %vm1031, %v1034, %v1037
        %v1039 = vsel %vm1028, nan, %v1038
        %v1040 = vand.u32 2147483647, %v309
        %vm1041 = vcmp.le.f32.partialorder %v1040, 0.7853982
        %vm1042 = vcmp.lt.s32.totalorder %v309, 0
        %v1043 = vand.u32 %v309, 2139095040
        %v1044 = vshrl.u32 %v1043, 23
        %v1045 = vsub.s32 %v1044, 127
        %v1046 = vand.u32 2147483647, %v309
        %v1047 = vand.u32 %v1046, 8388607
        %v1048 = vor.u32 %v1047, 8388608
        %v1049 = vsub.s32 0, %v1048
        %v1050 = vadd.s32 %v1045, 1
        %vm1051 = vcmp.gt.s32.totalorder %v1050, 0
        %v1052 = vsel %vm1051, %v1050, 0
        %v1053 = vshrl.u32 %v1052, 5
        %v1054 = vand.u32 %v1052, 31
        %v1055 = vsub.s32 32, %v1054
        %v1056 = vshrl.u32 683565275, %v1055
        %v1057 = vshll.u32 683565275, %v1054
        %v1058 = vshrl.u32 2475754826, %v1055
        %v1059 = vor.u32 %v1057, %v1058
        %v1060 = vshll.u32 2475754826, %v1054
        %v1061 = vshrl.u32 2131351028, %v1055
        %v1062 = vor.u32 %v1060, %v1061
        %v1063 = vshll.u32 2131351028, %v1054
        %v1064 = vshrl.u32 2102212464, %v1055
        %v1065 = vor.u32 %v1063, %v1064
        %v1066 = vshll.u32 2102212464, %v1054
        %v1067 = vshrl.u32 920167782, %v1055
        %v1068 = vor.u32 %v1066, %v1067
        %v1069 = vshll.u32 920167782, %v1054
        %v1070 = vshrl.u32 1326507024, %v1055
        %v1071 = vor.u32 %v1069, %v1070
        %vm1072 = vcmp.lt.s32.totalorder %v1053, 1
        %vm1073 = vcmp.lt.s32.totalorder %v1053, 2
        %vm1074 = vcmp.lt.s32.totalorder %v1053, 3
        %vm1075 = vcmp.lt.s32.totalorder %v1053, 4
        %v1076 = vsel %vm1072, %v1056, %v1059
        %v1077 = vsel %vm1075, %v1065, 2102212464
        %v1078 = vsel %vm1074, %v1062, %v1077
        %v1079 = vsel %vm1073, %v1076, %v1078
        %v1080 = vsel %vm1072, %v1059, %v1062
        %v1081 = vsel %vm1075, %v1068, 920167782
        %v1082 = vsel %vm1074, %v1065, %v1081
        %v1083 = vsel %vm1073, %v1080, %v1082
        %v1084 = vsel %vm1072, %v1062, %v1065
        %v1085 = vsel %vm1075, %v1071, 1326507024
        %v1086 = vsel %vm1074, %v1068, %v1085
        %v1087 = vsel %vm1073, %v1084, %v1086
        %v1088 = vshll.u32 %v1048, 8
        %v1089 = vmul.u32.u64.compose %v1088, %v1087
        %v1090 = vextract.low.u32 %v1089
        %v1091 = vextract.high.u32 %v1089
        %v1092 = vmul.u32.u64.compose %v1088, %v1083
        %v1093 = vextract.low.u32 %v1092
        %v1094 = vextract.high.u32 %v1092
        %v1095 = vmul.u32 %v1088, %v1079
        %v1096 = vadd.s32 %v1091, %v1093
        %vm1097 = vc.u32 %v1091, %v1093
        %v1098 = vadd.s32 %v1094, 1
        %v1099 = vsel %vm1097, %v1098, %v1094
        %v1100 = vadd.s32 %v1095, %v1099
        %v1101 = vadd.s32 %v1100, 536870912
        %v1102 = vshrl.u32 %v1101, 30
        %v1103 = vshll.u32 %v1102, 30
        %v1104 = vsub.s32 %v1100, %v1103
        %vm1105 = vcmp.lt.s32.totalorder %v1104, 0
        %v1106 = vsub.s32 0, %v1104
        %v1107 = vsel %vm1105, %v1106, %v1104
        %v1108 = vclz %v1107
        %v1109 = vsub.s32 %v1108, 2
        %vm1110 = vcmp.gt.s32.totalorder 0, %v1109
        %v1111 = vsel %vm1110, 0, %v1109
        %v1112 = vsub.s32 32, %v1111
        %v1113 = vshll.u32 %v1104, %v1111
        %v1114 = vshrl.u32 %v1096, %v1112
        %v1115 = vor.u32 %v1113, %v1114
        %v1116 = vsub.s32 4294967266, %v1111
        %v1117 = vadd.s32 %v1116, 127
        %v1118 = vshll.u32 %v1117, 23
        %v1119 = vor.u32 4788187, %v1118
        %v1120 = vand.u32 2147483647, %v1119
        %v1122 = vcvt.s32.f32 %v1115
        %v1123 = vmul.f32 %v1122, %v1120
        %v1124 = vxor.u32 %v1123, 2147483648
        %v1125 = vsel %vm1042, %v1124, %v1123
        %v1126 = vsub.s32 4, %v1102
        %v1127 = vsel %vm1042, %v1126, %v1102
        %v1128 = vsel %vm1041, %v309, %v1125
        %v1129 = vsel %vm1041, 0, %v1127
        %v1130 = vcosq.f32.pop %v1128
        %v1131 = vsinq.f32.pop %v1128
        %vm1132 = vweird.f32 %v309
        %v1133 = vadd.s32 %v1129, 3
        %v1134 = vand.u32 %v1133, 3
        %vm1135 = vcmp.lt.s32.totalorder %v1134, 2
        %vm1136 = vcmp.eq.s32.totalorder %v1134, 0
        %v1137 = vxor.u32 %v1131, 2147483648
        %v1138 = vsel %vm1136, %v1130, %v1137
        %vm1139 = vcmp.eq.s32.totalorder %v1134, 2
        %v1140 = vxor.u32 %v1130, 2147483648
        %v1141 = vsel %vm1139, %v1140, %v1131
        %v1142 = vsel %vm1135, %v1138, %v1141
        %v1143 = vsel %vm1132, nan, %v1142
        %v1144 = vand.u32 2147483647, %v274
        %vm1145 = vcmp.le.f32.partialorder %v1144, 0.7853982
        %vm1146 = vcmp.lt.s32.totalorder %v274, 0
        %v1147 = vand.u32 %v274, 2139095040
        %v1148 = vshrl.u32 %v1147, 23
        %v1149 = vsub.s32 %v1148, 127
        %v1150 = vand.u32 2147483647, %v274
        %v1151 = vand.u32 %v1150, 8388607
        %v1152 = vor.u32 %v1151, 8388608
        %v1153 = vsub.s32 0, %v1152
        %v1154 = vadd.s32 %v1149, 1
        %vm1155 = vcmp.gt.s32.totalorder %v1154, 0
        %v1156 = vsel %vm1155, %v1154, 0
        %v1157 = vshrl.u32 %v1156, 5
        %v1158 = vand.u32 %v1156, 31
        %v1159 = vsub.s32 32, %v1158
        %v1160 = vshrl.u32 683565275, %v1159
        %v1161 = vshll.u32 683565275, %v1158
        %v1162 = vshrl.u32 2475754826, %v1159
        %v1163 = vor.u32 %v1161, %v1162
        %v1164 = vshll.u32 2475754826, %v1158
        %v1165 = vshrl.u32 2131351028, %v1159
        %v1166 = vor.u32 %v1164, %v1165
        %v1167 = vshll.u32 2131351028, %v1158
        %v1168 = vshrl.u32 2102212464, %v1159
        %v1169 = vor.u32 %v1167, %v1168
        %v1170 = vshll.u32 2102212464, %v1158
        %v1171 = vshrl.u32 920167782, %v1159
        %v1172 = vor.u32 %v1170, %v1171
        %v1173 = vshll.u32 920167782, %v1158
        %v1174 = vshrl.u32 1326507024, %v1159
        %v1175 = vor.u32 %v1173, %v1174
        %vm1176 = vcmp.lt.s32.totalorder %v1157, 1
        %vm1177 = vcmp.lt.s32.totalorder %v1157, 2
        %vm1178 = vcmp.lt.s32.totalorder %v1157, 3
        %vm1179 = vcmp.lt.s32.totalorder %v1157, 4
        %v1180 = vsel %vm1176, %v1160, %v1163
        %v1181 = vsel %vm1179, %v1169, 2102212464
        %v1182 = vsel %vm1178, %v1166, %v1181
        %v1183 = vsel %vm1177, %v1180, %v1182
        %v1184 = vsel %vm1176, %v1163, %v1166
        %v1185 = vsel %vm1179, %v1172, 920167782
        %v1186 = vsel %vm1178, %v1169, %v1185
        %v1187 = vsel %vm1177, %v1184, %v1186
        %v1188 = vsel %vm1176, %v1166, %v1169
        %v1189 = vsel %vm1179, %v1175, 1326507024
        %v1190 = vsel %vm1178, %v1172, %v1189
        %v1191 = vsel %vm1177, %v1188, %v1190
        %v1192 = vshll.u32 %v1152, 8
        %v1193 = vmul.u32.u64.compose %v1192, %v1191
        %v1194 = vextract.low.u32 %v1193
        %v1195 = vextract.high.u32 %v1193
        %v1196 = vmul.u32.u64.compose %v1192, %v1187
        %v1197 = vextract.low.u32 %v1196
        %v1198 = vextract.high.u32 %v1196
        %v1199 = vmul.u32 %v1192, %v1183
        %v1200 = vadd.s32 %v1195, %v1197
        %vm1201 = vc.u32 %v1195, %v1197
        %v1202 = vadd.s32 %v1198, 1
        %v1203 = vsel %vm1201, %v1202, %v1198
        %v1204 = vadd.s32 %v1199, %v1203
        %v1205 = vadd.s32 %v1204, 536870912
        %v1206 = vshrl.u32 %v1205, 30
        %v1207 = vshll.u32 %v1206, 30
        %v1208 = vsub.s32 %v1204, %v1207
        %vm1209 = vcmp.lt.s32.totalorder %v1208, 0
        %v1210 = vsub.s32 0, %v1208
        %v1211 = vsel %vm1209, %v1210, %v1208
        %v1212 = vclz %v1211
        %v1213 = vsub.s32 %v1212, 2
        %vm1214 = vcmp.gt.s32.totalorder 0, %v1213
        %v1215 = vsel %vm1214, 0, %v1213
        %v1216 = vsub.s32 32, %v1215
        %v1217 = vshll.u32 %v1208, %v1215
        %v1218 = vshrl.u32 %v1200, %v1216
        %v1219 = vor.u32 %v1217, %v1218
        %v1220 = vsub.s32 4294967266, %v1215
        %v1221 = vadd.s32 %v1220, 127
        %v1222 = vshll.u32 %v1221, 23
        %v1223 = vor.u32 4788187, %v1222
        %v1224 = vand.u32 2147483647, %v1223
        %v1226 = vcvt.s32.f32 %v1219
        %v1227 = vmul.f32 %v1226, %v1224
        %v1228 = vxor.u32 %v1227, 2147483648
        %v1229 = vsel %vm1146, %v1228, %v1227
        %v1230 = vsub.s32 4, %v1206
        %v1231 = vsel %vm1146, %v1230, %v1206
        %v1232 = vsel %vm1145, %v274, %v1229
        %v1233 = vsel %vm1145, 0, %v1231
        %v1234 = vcosq.f32.pop %v1232
        %v1235 = vsinq.f32.pop %v1232
        %vm1236 = vweird.f32 %v274
        %v1237 = vand.u32 %v1233, 3
        %vm1238 = vcmp.lt.s32.totalorder %v1237, 2
        %vm1239 = vcmp.eq.s32.totalorder %v1237, 0
        %v1240 = vxor.u32 %v1235, 2147483648
        %v1241 = vsel %vm1239, %v1234, %v1240
        %vm1242 = vcmp.eq.s32.totalorder %v1237, 2
        %v1243 = vxor.u32 %v1234, 2147483648
        %v1244 = vsel %vm1242, %v1243, %v1235
        %v1245 = vsel %vm1238, %v1241, %v1244
        %v1246 = vsel %vm1236, nan, %v1245
        %v1247 = vand.u32 2147483647, %v279
        %vm1248 = vcmp.le.f32.partialorder %v1247, 0.7853982
        %vm1249 = vcmp.lt.s32.totalorder %v279, 0
        %v1250 = vand.u32 %v279, 2139095040
        %v1251 = vshrl.u32 %v1250, 23
        %v1252 = vsub.s32 %v1251, 127
        %v1253 = vand.u32 2147483647, %v279
        %v1254 = vand.u32 %v1253, 8388607
        %v1255 = vor.u32 %v1254, 8388608
        %v1256 = vsub.s32 0, %v1255
        %v1257 = vadd.s32 %v1252, 1
        %vm1258 = vcmp.gt.s32.totalorder %v1257, 0
        %v1259 = vsel %vm1258, %v1257, 0
        %v1260 = vshrl.u32 %v1259, 5
        %v1261 = vand.u32 %v1259, 31
        %v1262 = vsub.s32 32, %v1261
        %v1263 = vshrl.u32 683565275, %v1262
        %v1264 = vshll.u32 683565275, %v1261
        %v1265 = vshrl.u32 2475754826, %v1262
        %v1266 = vor.u32 %v1264, %v1265
        %v1267 = vshll.u32 2475754826, %v1261
        %v1268 = vshrl.u32 2131351028, %v1262
        %v1269 = vor.u32 %v1267, %v1268
        %v1270 = vshll.u32 2131351028, %v1261
        %v1271 = vshrl.u32 2102212464, %v1262
        %v1272 = vor.u32 %v1270, %v1271
        %v1273 = vshll.u32 2102212464, %v1261
        %v1274 = vshrl.u32 920167782, %v1262
        %v1275 = vor.u32 %v1273, %v1274
        %v1276 = vshll.u32 920167782, %v1261
        %v1277 = vshrl.u32 1326507024, %v1262
        %v1278 = vor.u32 %v1276, %v1277
        %vm1279 = vcmp.lt.s32.totalorder %v1260, 1
        %vm1280 = vcmp.lt.s32.totalorder %v1260, 2
        %vm1281 = vcmp.lt.s32.totalorder %v1260, 3
        %vm1282 = vcmp.lt.s32.totalorder %v1260, 4
        %v1283 = vsel %vm1279, %v1263, %v1266
        %v1284 = vsel %vm1282, %v1272, 2102212464
        %v1285 = vsel %vm1281, %v1269, %v1284
        %v1286 = vsel %vm1280, %v1283, %v1285
        %v1287 = vsel %vm1279, %v1266, %v1269
        %v1288 = vsel %vm1282, %v1275, 920167782
        %v1289 = vsel %vm1281, %v1272, %v1288
        %v1290 = vsel %vm1280, %v1287, %v1289
        %v1291 = vsel %vm1279, %v1269, %v1272
        %v1292 = vsel %vm1282, %v1278, 1326507024
        %v1293 = vsel %vm1281, %v1275, %v1292
        %v1294 = vsel %vm1280, %v1291, %v1293
        %v1295 = vshll.u32 %v1255, 8
        %v1296 = vmul.u32.u64.compose %v1295, %v1294
        %v1297 = vextract.low.u32 %v1296
        %v1298 = vextract.high.u32 %v1296
        %v1299 = vmul.u32.u64.compose %v1295, %v1290
        %v1300 = vextract.low.u32 %v1299
        %v1301 = vextract.high.u32 %v1299
        %v1302 = vmul.u32 %v1295, %v1286
        %v1303 = vadd.s32 %v1298, %v1300
        %vm1304 = vc.u32 %v1298, %v1300
        %v1305 = vadd.s32 %v1301, 1
        %v1306 = vsel %vm1304, %v1305, %v1301
        %v1307 = vadd.s32 %v1302, %v1306
        %v1308 = vadd.s32 %v1307, 536870912
        %v1309 = vshrl.u32 %v1308, 30
        %v1310 = vshll.u32 %v1309, 30
        %v1311 = vsub.s32 %v1307, %v1310
        %vm1312 = vcmp.lt.s32.totalorder %v1311, 0
        %v1313 = vsub.s32 0, %v1311
        %v1314 = vsel %vm1312, %v1313, %v1311
        %v1315 = vclz %v1314
        %v1316 = vsub.s32 %v1315, 2
        %vm1317 = vcmp.gt.s32.totalorder 0, %v1316
        %v1318 = vsel %vm1317, 0, %v1316
        %v1319 = vsub.s32 32, %v1318
        %v1320 = vshll.u32 %v1311, %v1318
        %v1321 = vshrl.u32 %v1303, %v1319
        %v1322 = vor.u32 %v1320, %v1321
        %v1323 = vsub.s32 4294967266, %v1318
        %v1324 = vadd.s32 %v1323, 127
        %v1325 = vshll.u32 %v1324, 23
        %v1326 = vor.u32 4788187, %v1325
        %v1327 = vand.u32 2147483647, %v1326
        %v1329 = vcvt.s32.f32 %v1322
        %v1330 = vmul.f32 %v1329, %v1327
        %v1331 = vxor.u32 %v1330, 2147483648
        %v1332 = vsel %vm1249, %v1331, %v1330
        %v1333 = vsub.s32 4, %v1309
        %v1334 = vsel %vm1249, %v1333, %v1309
        %v1335 = vsel %vm1248, %v279, %v1332
        %v1336 = vsel %vm1248, 0, %v1334
        %v1337 = vcosq.f32.pop %v1335
        %v1338 = vsinq.f32.pop %v1335
        %vm1339 = vweird.f32 %v279
        %v1340 = vand.u32 %v1336, 3
        %vm1341 = vcmp.lt.s32.totalorder %v1340, 2
        %vm1342 = vcmp.eq.s32.totalorder %v1340, 0
        %v1343 = vxor.u32 %v1338, 2147483648
        %v1344 = vsel %vm1342, %v1337, %v1343
        %vm1345 = vcmp.eq.s32.totalorder %v1340, 2
        %v1346 = vxor.u32 %v1337, 2147483648
        %v1347 = vsel %vm1345, %v1346, %v1338
        %v1348 = vsel %vm1341, %v1344, %v1347
        %v1349 = vsel %vm1339, nan, %v1348
        %v1350 = vand.u32 2147483647, %v284
        %vm1351 = vcmp.le.f32.partialorder %v1350, 0.7853982
        %vm1352 = vcmp.lt.s32.totalorder %v284, 0
        %v1353 = vand.u32 %v284, 2139095040
        %v1354 = vshrl.u32 %v1353, 23
        %v1355 = vsub.s32 %v1354, 127
        %v1356 = vand.u32 2147483647, %v284
        %v1357 = vand.u32 %v1356, 8388607
        %v1358 = vor.u32 %v1357, 8388608
        %v1359 = vsub.s32 0, %v1358
        %v1360 = vadd.s32 %v1355, 1
        %vm1361 = vcmp.gt.s32.totalorder %v1360, 0
        %v1362 = vsel %vm1361, %v1360, 0
        %v1363 = vshrl.u32 %v1362, 5
        %v1364 = vand.u32 %v1362, 31
        %v1365 = vsub.s32 32, %v1364
        %v1366 = vshrl.u32 683565275, %v1365
        %v1367 = vshll.u32 683565275, %v1364
        %v1368 = vshrl.u32 2475754826, %v1365
        %v1369 = vor.u32 %v1367, %v1368
        %v1370 = vshll.u32 2475754826, %v1364
        %v1371 = vshrl.u32 2131351028, %v1365
        %v1372 = vor.u32 %v1370, %v1371
        %v1373 = vshll.u32 2131351028, %v1364
        %v1374 = vshrl.u32 2102212464, %v1365
        %v1375 = vor.u32 %v1373, %v1374
        %v1376 = vshll.u32 2102212464, %v1364
        %v1377 = vshrl.u32 920167782, %v1365
        %v1378 = vor.u32 %v1376, %v1377
        %v1379 = vshll.u32 920167782, %v1364
        %v1380 = vshrl.u32 1326507024, %v1365
        %v1381 = vor.u32 %v1379, %v1380
        %vm1382 = vcmp.lt.s32.totalorder %v1363, 1
        %vm1383 = vcmp.lt.s32.totalorder %v1363, 2
        %vm1384 = vcmp.lt.s32.totalorder %v1363, 3
        %vm1385 = vcmp.lt.s32.totalorder %v1363, 4
        %v1386 = vsel %vm1382, %v1366, %v1369
        %v1387 = vsel %vm1385, %v1375, 2102212464
        %v1388 = vsel %vm1384, %v1372, %v1387
        %v1389 = vsel %vm1383, %v1386, %v1388
        %v1390 = vsel %vm1382, %v1369, %v1372
        %v1391 = vsel %vm1385, %v1378, 920167782
        %v1392 = vsel %vm1384, %v1375, %v1391
        %v1393 = vsel %vm1383, %v1390, %v1392
        %v1394 = vsel %vm1382, %v1372, %v1375
        %v1395 = vsel %vm1385, %v1381, 1326507024
        %v1396 = vsel %vm1384, %v1378, %v1395
        %v1397 = vsel %vm1383, %v1394, %v1396
        %v1398 = vshll.u32 %v1358, 8
        %v1399 = vmul.u32.u64.compose %v1398, %v1397
        %v1400 = vextract.low.u32 %v1399
        %v1401 = vextract.high.u32 %v1399
        %v1402 = vmul.u32.u64.compose %v1398, %v1393
        %v1403 = vextract.low.u32 %v1402
        %v1404 = vextract.high.u32 %v1402
        %v1405 = vmul.u32 %v1398, %v1389
        %v1406 = vadd.s32 %v1401, %v1403
        %vm1407 = vc.u32 %v1401, %v1403
        %v1408 = vadd.s32 %v1404, 1
        %v1409 = vsel %vm1407, %v1408, %v1404
        %v1410 = vadd.s32 %v1405, %v1409
        %v1411 = vadd.s32 %v1410, 536870912
        %v1412 = vshrl.u32 %v1411, 30
        %v1413 = vshll.u32 %v1412, 30
        %v1414 = vsub.s32 %v1410, %v1413
        %vm1415 = vcmp.lt.s32.totalorder %v1414, 0
        %v1416 = vsub.s32 0, %v1414
        %v1417 = vsel %vm1415, %v1416, %v1414
        %v1418 = vclz %v1417
        %v1419 = vsub.s32 %v1418, 2
        %vm1420 = vcmp.gt.s32.totalorder 0, %v1419
        %v1421 = vsel %vm1420, 0, %v1419
        %v1422 = vsub.s32 32, %v1421
        %v1423 = vshll.u32 %v1414, %v1421
        %v1424 = vshrl.u32 %v1406, %v1422
        %v1425 = vor.u32 %v1423, %v1424
        %v1426 = vsub.s32 4294967266, %v1421
        %v1427 = vadd.s32 %v1426, 127
        %v1428 = vshll.u32 %v1427, 23
        %v1429 = vor.u32 4788187, %v1428
        %v1430 = vand.u32 2147483647, %v1429
        %v1432 = vcvt.s32.f32 %v1425
        %v1433 = vmul.f32 %v1432, %v1430
        %v1434 = vxor.u32 %v1433, 2147483648
        %v1435 = vsel %vm1352, %v1434, %v1433
        %v1436 = vsub.s32 4, %v1412
        %v1437 = vsel %vm1352, %v1436, %v1412
        %v1438 = vsel %vm1351, %v284, %v1435
        %v1439 = vsel %vm1351, 0, %v1437
        %v1440 = vcosq.f32.pop %v1438
        %v1441 = vsinq.f32.pop %v1438
        %vm1442 = vweird.f32 %v284
        %v1443 = vand.u32 %v1439, 3
        %vm1444 = vcmp.lt.s32.totalorder %v1443, 2
        %vm1445 = vcmp.eq.s32.totalorder %v1443, 0
        %v1446 = vxor.u32 %v1441, 2147483648
        %v1447 = vsel %vm1445, %v1440, %v1446
        %vm1448 = vcmp.eq.s32.totalorder %v1443, 2
        %v1449 = vxor.u32 %v1440, 2147483648
        %v1450 = vsel %vm1448, %v1449, %v1441
        %v1451 = vsel %vm1444, %v1447, %v1450
        %v1452 = vsel %vm1442, nan, %v1451
        %v1453 = vand.u32 2147483647, %v289
        %vm1454 = vcmp.le.f32.partialorder %v1453, 0.7853982
        %vm1455 = vcmp.lt.s32.totalorder %v289, 0
        %v1456 = vand.u32 %v289, 2139095040
        %v1457 = vshrl.u32 %v1456, 23
        %v1458 = vsub.s32 %v1457, 127
        %v1459 = vand.u32 2147483647, %v289
        %v1460 = vand.u32 %v1459, 8388607
        %v1461 = vor.u32 %v1460, 8388608
        %v1462 = vsub.s32 0, %v1461
        %v1463 = vadd.s32 %v1458, 1
        %vm1464 = vcmp.gt.s32.totalorder %v1463, 0
        %v1465 = vsel %vm1464, %v1463, 0
        %v1466 = vshrl.u32 %v1465, 5
        %v1467 = vand.u32 %v1465, 31
        %v1468 = vsub.s32 32, %v1467
        %v1469 = vshrl.u32 683565275, %v1468
        %v1470 = vshll.u32 683565275, %v1467
        %v1471 = vshrl.u32 2475754826, %v1468
        %v1472 = vor.u32 %v1470, %v1471
        %v1473 = vshll.u32 2475754826, %v1467
        %v1474 = vshrl.u32 2131351028, %v1468
        %v1475 = vor.u32 %v1473, %v1474
        %v1476 = vshll.u32 2131351028, %v1467
        %v1477 = vshrl.u32 2102212464, %v1468
        %v1478 = vor.u32 %v1476, %v1477
        %v1479 = vshll.u32 2102212464, %v1467
        %v1480 = vshrl.u32 920167782, %v1468
        %v1481 = vor.u32 %v1479, %v1480
        %v1482 = vshll.u32 920167782, %v1467
        %v1483 = vshrl.u32 1326507024, %v1468
        %v1484 = vor.u32 %v1482, %v1483
        %vm1485 = vcmp.lt.s32.totalorder %v1466, 1
        %vm1486 = vcmp.lt.s32.totalorder %v1466, 2
        %vm1487 = vcmp.lt.s32.totalorder %v1466, 3
        %vm1488 = vcmp.lt.s32.totalorder %v1466, 4
        %v1489 = vsel %vm1485, %v1469, %v1472
        %v1490 = vsel %vm1488, %v1478, 2102212464
        %v1491 = vsel %vm1487, %v1475, %v1490
        %v1492 = vsel %vm1486, %v1489, %v1491
        %v1493 = vsel %vm1485, %v1472, %v1475
        %v1494 = vsel %vm1488, %v1481, 920167782
        %v1495 = vsel %vm1487, %v1478, %v1494
        %v1496 = vsel %vm1486, %v1493, %v1495
        %v1497 = vsel %vm1485, %v1475, %v1478
        %v1498 = vsel %vm1488, %v1484, 1326507024
        %v1499 = vsel %vm1487, %v1481, %v1498
        %v1500 = vsel %vm1486, %v1497, %v1499
        %v1501 = vshll.u32 %v1461, 8
        %v1502 = vmul.u32.u64.compose %v1501, %v1500
        %v1503 = vextract.low.u32 %v1502
        %v1504 = vextract.high.u32 %v1502
        %v1505 = vmul.u32.u64.compose %v1501, %v1496
        %v1506 = vextract.low.u32 %v1505
        %v1507 = vextract.high.u32 %v1505
        %v1508 = vmul.u32 %v1501, %v1492
        %v1509 = vadd.s32 %v1504, %v1506
        %vm1510 = vc.u32 %v1504, %v1506
        %v1511 = vadd.s32 %v1507, 1
        %v1512 = vsel %vm1510, %v1511, %v1507
        %v1513 = vadd.s32 %v1508, %v1512
        %v1514 = vadd.s32 %v1513, 536870912
        %v1515 = vshrl.u32 %v1514, 30
        %v1516 = vshll.u32 %v1515, 30
        %v1517 = vsub.s32 %v1513, %v1516
        %vm1518 = vcmp.lt.s32.totalorder %v1517, 0
        %v1519 = vsub.s32 0, %v1517
        %v1520 = vsel %vm1518, %v1519, %v1517
        %v1521 = vclz %v1520
        %v1522 = vsub.s32 %v1521, 2
        %vm1523 = vcmp.gt.s32.totalorder 0, %v1522
        %v1524 = vsel %vm1523, 0, %v1522
        %v1525 = vsub.s32 32, %v1524
        %v1526 = vshll.u32 %v1517, %v1524
        %v1527 = vshrl.u32 %v1509, %v1525
        %v1528 = vor.u32 %v1526, %v1527
        %v1529 = vsub.s32 4294967266, %v1524
        %v1530 = vadd.s32 %v1529, 127
        %v1531 = vshll.u32 %v1530, 23
        %v1532 = vor.u32 4788187, %v1531
        %v1533 = vand.u32 2147483647, %v1532
        %v1535 = vcvt.s32.f32 %v1528
        %v1536 = vmul.f32 %v1535, %v1533
        %v1537 = vxor.u32 %v1536, 2147483648
        %v1538 = vsel %vm1455, %v1537, %v1536
        %v1539 = vsub.s32 4, %v1515
        %v1540 = vsel %vm1455, %v1539, %v1515
        %v1541 = vsel %vm1454, %v289, %v1538
        %v1542 = vsel %vm1454, 0, %v1540
        %v1543 = vcosq.f32.pop %v1541
        %v1544 = vsinq.f32.pop %v1541
        %vm1545 = vweird.f32 %v289
        %v1546 = vand.u32 %v1542, 3
        %vm1547 = vcmp.lt.s32.totalorder %v1546, 2
        %vm1548 = vcmp.eq.s32.totalorder %v1546, 0
        %v1549 = vxor.u32 %v1544, 2147483648
        %v1550 = vsel %vm1548, %v1543, %v1549
        %vm1551 = vcmp.eq.s32.totalorder %v1546, 2
        %v1552 = vxor.u32 %v1543, 2147483648
        %v1553 = vsel %vm1551, %v1552, %v1544
        %v1554 = vsel %vm1547, %v1550, %v1553
        %v1555 = vsel %vm1545, nan, %v1554
        %v1556 = vand.u32 2147483647, %v294
        %vm1557 = vcmp.le.f32.partialorder %v1556, 0.7853982
        %vm1558 = vcmp.lt.s32.totalorder %v294, 0
        %v1559 = vand.u32 %v294, 2139095040
        %v1560 = vshrl.u32 %v1559, 23
        %v1561 = vsub.s32 %v1560, 127
        %v1562 = vand.u32 2147483647, %v294
        %v1563 = vand.u32 %v1562, 8388607
        %v1564 = vor.u32 %v1563, 8388608
        %v1565 = vsub.s32 0, %v1564
        %v1566 = vadd.s32 %v1561, 1
        %vm1567 = vcmp.gt.s32.totalorder %v1566, 0
        %v1568 = vsel %vm1567, %v1566, 0
        %v1569 = vshrl.u32 %v1568, 5
        %v1570 = vand.u32 %v1568, 31
        %v1571 = vsub.s32 32, %v1570
        %v1572 = vshrl.u32 683565275, %v1571
        %v1573 = vshll.u32 683565275, %v1570
        %v1574 = vshrl.u32 2475754826, %v1571
        %v1575 = vor.u32 %v1573, %v1574
        %v1576 = vshll.u32 2475754826, %v1570
        %v1577 = vshrl.u32 2131351028, %v1571
        %v1578 = vor.u32 %v1576, %v1577
        %v1579 = vshll.u32 2131351028, %v1570
        %v1580 = vshrl.u32 2102212464, %v1571
        %v1581 = vor.u32 %v1579, %v1580
        %v1582 = vshll.u32 2102212464, %v1570
        %v1583 = vshrl.u32 920167782, %v1571
        %v1584 = vor.u32 %v1582, %v1583
        %v1585 = vshll.u32 920167782, %v1570
        %v1586 = vshrl.u32 1326507024, %v1571
        %v1587 = vor.u32 %v1585, %v1586
        %vm1588 = vcmp.lt.s32.totalorder %v1569, 1
        %vm1589 = vcmp.lt.s32.totalorder %v1569, 2
        %vm1590 = vcmp.lt.s32.totalorder %v1569, 3
        %vm1591 = vcmp.lt.s32.totalorder %v1569, 4
        %v1592 = vsel %vm1588, %v1572, %v1575
        %v1593 = vsel %vm1591, %v1581, 2102212464
        %v1594 = vsel %vm1590, %v1578, %v1593
        %v1595 = vsel %vm1589, %v1592, %v1594
        %v1596 = vsel %vm1588, %v1575, %v1578
        %v1597 = vsel %vm1591, %v1584, 920167782
        %v1598 = vsel %vm1590, %v1581, %v1597
        %v1599 = vsel %vm1589, %v1596, %v1598
        %v1600 = vsel %vm1588, %v1578, %v1581
        %v1601 = vsel %vm1591, %v1587, 1326507024
        %v1602 = vsel %vm1590, %v1584, %v1601
        %v1603 = vsel %vm1589, %v1600, %v1602
        %v1604 = vshll.u32 %v1564, 8
        %v1605 = vmul.u32.u64.compose %v1604, %v1603
        %v1606 = vextract.low.u32 %v1605
        %v1607 = vextract.high.u32 %v1605
        %v1608 = vmul.u32.u64.compose %v1604, %v1599
        %v1609 = vextract.low.u32 %v1608
        %v1610 = vextract.high.u32 %v1608
        %v1611 = vmul.u32 %v1604, %v1595
        %v1612 = vadd.s32 %v1607, %v1609
        %vm1613 = vc.u32 %v1607, %v1609
        %v1614 = vadd.s32 %v1610, 1
        %v1615 = vsel %vm1613, %v1614, %v1610
        %v1616 = vadd.s32 %v1611, %v1615
        %v1617 = vadd.s32 %v1616, 536870912
        %v1618 = vshrl.u32 %v1617, 30
        %v1619 = vshll.u32 %v1618, 30
        %v1620 = vsub.s32 %v1616, %v1619
        %vm1621 = vcmp.lt.s32.totalorder %v1620, 0
        %v1622 = vsub.s32 0, %v1620
        %v1623 = vsel %vm1621, %v1622, %v1620
        %v1624 = vclz %v1623
        %v1625 = vsub.s32 %v1624, 2
        %vm1626 = vcmp.gt.s32.totalorder 0, %v1625
        %v1627 = vsel %vm1626, 0, %v1625
        %v1628 = vsub.s32 32, %v1627
        %v1629 = vshll.u32 %v1620, %v1627
        %v1630 = vshrl.u32 %v1612, %v1628
        %v1631 = vor.u32 %v1629, %v1630
        %v1632 = vsub.s32 4294967266, %v1627
        %v1633 = vadd.s32 %v1632, 127
        %v1634 = vshll.u32 %v1633, 23
        %v1635 = vor.u32 4788187, %v1634
        %v1636 = vand.u32 2147483647, %v1635
        %v1638 = vcvt.s32.f32 %v1631
        %v1639 = vmul.f32 %v1638, %v1636
        %v1640 = vxor.u32 %v1639, 2147483648
        %v1641 = vsel %vm1558, %v1640, %v1639
        %v1642 = vsub.s32 4, %v1618
        %v1643 = vsel %vm1558, %v1642, %v1618
        %v1644 = vsel %vm1557, %v294, %v1641
        %v1645 = vsel %vm1557, 0, %v1643
        %v1646 = vcosq.f32.pop %v1644
        %v1647 = vsinq.f32.pop %v1644
        %vm1648 = vweird.f32 %v294
        %v1649 = vand.u32 %v1645, 3
        %vm1650 = vcmp.lt.s32.totalorder %v1649, 2
        %vm1651 = vcmp.eq.s32.totalorder %v1649, 0
        %v1652 = vxor.u32 %v1647, 2147483648
        %v1653 = vsel %vm1651, %v1646, %v1652
        %vm1654 = vcmp.eq.s32.totalorder %v1649, 2
        %v1655 = vxor.u32 %v1646, 2147483648
        %v1656 = vsel %vm1654, %v1655, %v1647
        %v1657 = vsel %vm1650, %v1653, %v1656
        %v1658 = vsel %vm1648, nan, %v1657
        %v1659 = vand.u32 2147483647, %v299
        %vm1660 = vcmp.le.f32.partialorder %v1659, 0.7853982
        %vm1661 = vcmp.lt.s32.totalorder %v299, 0
        %v1662 = vand.u32 %v299, 2139095040
        %v1663 = vshrl.u32 %v1662, 23
        %v1664 = vsub.s32 %v1663, 127
        %v1665 = vand.u32 2147483647, %v299
        %v1666 = vand.u32 %v1665, 8388607
        %v1667 = vor.u32 %v1666, 8388608
        %v1668 = vsub.s32 0, %v1667
        %v1669 = vadd.s32 %v1664, 1
        %vm1670 = vcmp.gt.s32.totalorder %v1669, 0
        %v1671 = vsel %vm1670, %v1669, 0
        %v1672 = vshrl.u32 %v1671, 5
        %v1673 = vand.u32 %v1671, 31
        %v1674 = vsub.s32 32, %v1673
        %v1675 = vshrl.u32 683565275, %v1674
        %v1676 = vshll.u32 683565275, %v1673
        %v1677 = vshrl.u32 2475754826, %v1674
        %v1678 = vor.u32 %v1676, %v1677
        %v1679 = vshll.u32 2475754826, %v1673
        %v1680 = vshrl.u32 2131351028, %v1674
        %v1681 = vor.u32 %v1679, %v1680
        %v1682 = vshll.u32 2131351028, %v1673
        %v1683 = vshrl.u32 2102212464, %v1674
        %v1684 = vor.u32 %v1682, %v1683
        %v1685 = vshll.u32 2102212464, %v1673
        %v1686 = vshrl.u32 920167782, %v1674
        %v1687 = vor.u32 %v1685, %v1686
        %v1688 = vshll.u32 920167782, %v1673
        %v1689 = vshrl.u32 1326507024, %v1674
        %v1690 = vor.u32 %v1688, %v1689
        %vm1691 = vcmp.lt.s32.totalorder %v1672, 1
        %vm1692 = vcmp.lt.s32.totalorder %v1672, 2
        %vm1693 = vcmp.lt.s32.totalorder %v1672, 3
        %vm1694 = vcmp.lt.s32.totalorder %v1672, 4
        %v1695 = vsel %vm1691, %v1675, %v1678
        %v1696 = vsel %vm1694, %v1684, 2102212464
        %v1697 = vsel %vm1693, %v1681, %v1696
        %v1698 = vsel %vm1692, %v1695, %v1697
        %v1699 = vsel %vm1691, %v1678, %v1681
        %v1700 = vsel %vm1694, %v1687, 920167782
        %v1701 = vsel %vm1693, %v1684, %v1700
        %v1702 = vsel %vm1692, %v1699, %v1701
        %v1703 = vsel %vm1691, %v1681, %v1684
        %v1704 = vsel %vm1694, %v1690, 1326507024
        %v1705 = vsel %vm1693, %v1687, %v1704
        %v1706 = vsel %vm1692, %v1703, %v1705
        %v1707 = vshll.u32 %v1667, 8
        %v1708 = vmul.u32.u64.compose %v1707, %v1706
        %v1709 = vextract.low.u32 %v1708
        %v1710 = vextract.high.u32 %v1708
        %v1711 = vmul.u32.u64.compose %v1707, %v1702
        %v1712 = vextract.low.u32 %v1711
        %v1713 = vextract.high.u32 %v1711
        %v1714 = vmul.u32 %v1707, %v1698
        %v1715 = vadd.s32 %v1710, %v1712
        %vm1716 = vc.u32 %v1710, %v1712
        %v1717 = vadd.s32 %v1713, 1
        %v1718 = vsel %vm1716, %v1717, %v1713
        %v1719 = vadd.s32 %v1714, %v1718
        %v1720 = vadd.s32 %v1719, 536870912
        %v1721 = vshrl.u32 %v1720, 30
        %v1722 = vshll.u32 %v1721, 30
        %v1723 = vsub.s32 %v1719, %v1722
        %vm1724 = vcmp.lt.s32.totalorder %v1723, 0
        %v1725 = vsub.s32 0, %v1723
        %v1726 = vsel %vm1724, %v1725, %v1723
        %v1727 = vclz %v1726
        %v1728 = vsub.s32 %v1727, 2
        %vm1729 = vcmp.gt.s32.totalorder 0, %v1728
        %v1730 = vsel %vm1729, 0, %v1728
        %v1731 = vsub.s32 32, %v1730
        %v1732 = vshll.u32 %v1723, %v1730
        %v1733 = vshrl.u32 %v1715, %v1731
        %v1734 = vor.u32 %v1732, %v1733
        %v1735 = vsub.s32 4294967266, %v1730
        %v1736 = vadd.s32 %v1735, 127
        %v1737 = vshll.u32 %v1736, 23
        %v1738 = vor.u32 4788187, %v1737
        %v1739 = vand.u32 2147483647, %v1738
        %v1741 = vcvt.s32.f32 %v1734
        %v1742 = vmul.f32 %v1741, %v1739
        %v1743 = vxor.u32 %v1742, 2147483648
        %v1744 = vsel %vm1661, %v1743, %v1742
        %v1745 = vsub.s32 4, %v1721
        %v1746 = vsel %vm1661, %v1745, %v1721
        %v1747 = vsel %vm1660, %v299, %v1744
        %v1748 = vsel %vm1660, 0, %v1746
        %v1749 = vcosq.f32.pop %v1747
        %v1750 = vsinq.f32.pop %v1747
        %vm1751 = vweird.f32 %v299
        %v1752 = vand.u32 %v1748, 3
        %vm1753 = vcmp.lt.s32.totalorder %v1752, 2
        %vm1754 = vcmp.eq.s32.totalorder %v1752, 0
        %v1755 = vxor.u32 %v1750, 2147483648
        %v1756 = vsel %vm1754, %v1749, %v1755
        %vm1757 = vcmp.eq.s32.totalorder %v1752, 2
        %v1758 = vxor.u32 %v1749, 2147483648
        %v1759 = vsel %vm1757, %v1758, %v1750
        %v1760 = vsel %vm1753, %v1756, %v1759
        %v1761 = vsel %vm1751, nan, %v1760
        %v1762 = vand.u32 2147483647, %v304
        %vm1763 = vcmp.le.f32.partialorder %v1762, 0.7853982
        %vm1764 = vcmp.lt.s32.totalorder %v304, 0
        %v1765 = vand.u32 %v304, 2139095040
        %v1766 = vshrl.u32 %v1765, 23
        %v1767 = vsub.s32 %v1766, 127
        %v1768 = vand.u32 2147483647, %v304
        %v1769 = vand.u32 %v1768, 8388607
        %v1770 = vor.u32 %v1769, 8388608
        %v1771 = vsub.s32 0, %v1770
        %v1772 = vadd.s32 %v1767, 1
        %vm1773 = vcmp.gt.s32.totalorder %v1772, 0
        %v1774 = vsel %vm1773, %v1772, 0
        %v1775 = vshrl.u32 %v1774, 5
        %v1776 = vand.u32 %v1774, 31
        %v1777 = vsub.s32 32, %v1776
        %v1778 = vshrl.u32 683565275, %v1777
        %v1779 = vshll.u32 683565275, %v1776
        %v1780 = vshrl.u32 2475754826, %v1777
        %v1781 = vor.u32 %v1779, %v1780
        %v1782 = vshll.u32 2475754826, %v1776
        %v1783 = vshrl.u32 2131351028, %v1777
        %v1784 = vor.u32 %v1782, %v1783
        %v1785 = vshll.u32 2131351028, %v1776
        %v1786 = vshrl.u32 2102212464, %v1777
        %v1787 = vor.u32 %v1785, %v1786
        %v1788 = vshll.u32 2102212464, %v1776
        %v1789 = vshrl.u32 920167782, %v1777
        %v1790 = vor.u32 %v1788, %v1789
        %v1791 = vshll.u32 920167782, %v1776
        %v1792 = vshrl.u32 1326507024, %v1777
        %v1793 = vor.u32 %v1791, %v1792
        %vm1794 = vcmp.lt.s32.totalorder %v1775, 1
        %vm1795 = vcmp.lt.s32.totalorder %v1775, 2
        %vm1796 = vcmp.lt.s32.totalorder %v1775, 3
        %vm1797 = vcmp.lt.s32.totalorder %v1775, 4
        %v1798 = vsel %vm1794, %v1778, %v1781
        %v1799 = vsel %vm1797, %v1787, 2102212464
        %v1800 = vsel %vm1796, %v1784, %v1799
        %v1801 = vsel %vm1795, %v1798, %v1800
        %v1802 = vsel %vm1794, %v1781, %v1784
        %v1803 = vsel %vm1797, %v1790, 920167782
        %v1804 = vsel %vm1796, %v1787, %v1803
        %v1805 = vsel %vm1795, %v1802, %v1804
        %v1806 = vsel %vm1794, %v1784, %v1787
        %v1807 = vsel %vm1797, %v1793, 1326507024
        %v1808 = vsel %vm1796, %v1790, %v1807
        %v1809 = vsel %vm1795, %v1806, %v1808
        %v1810 = vshll.u32 %v1770, 8
        %v1811 = vmul.u32.u64.compose %v1810, %v1809
        %v1812 = vextract.low.u32 %v1811
        %v1813 = vextract.high.u32 %v1811
        %v1814 = vmul.u32.u64.compose %v1810, %v1805
        %v1815 = vextract.low.u32 %v1814
        %v1816 = vextract.high.u32 %v1814
        %v1817 = vmul.u32 %v1810, %v1801
        %v1818 = vadd.s32 %v1813, %v1815
        %vm1819 = vc.u32 %v1813, %v1815
        %v1820 = vadd.s32 %v1816, 1
        %v1821 = vsel %vm1819, %v1820, %v1816
        %v1822 = vadd.s32 %v1817, %v1821
        %v1823 = vadd.s32 %v1822, 536870912
        %v1824 = vshrl.u32 %v1823, 30
        %v1825 = vshll.u32 %v1824, 30
        %v1826 = vsub.s32 %v1822, %v1825
        %vm1827 = vcmp.lt.s32.totalorder %v1826, 0
        %v1828 = vsub.s32 0, %v1826
        %v1829 = vsel %vm1827, %v1828, %v1826
        %v1830 = vclz %v1829
        %v1831 = vsub.s32 %v1830, 2
        %vm1832 = vcmp.gt.s32.totalorder 0, %v1831
        %v1833 = vsel %vm1832, 0, %v1831
        %v1834 = vsub.s32 32, %v1833
        %v1835 = vshll.u32 %v1826, %v1833
        %v1836 = vshrl.u32 %v1818, %v1834
        %v1837 = vor.u32 %v1835, %v1836
        %v1838 = vsub.s32 4294967266, %v1833
        %v1839 = vadd.s32 %v1838, 127
        %v1840 = vshll.u32 %v1839, 23
        %v1841 = vor.u32 4788187, %v1840
        %v1842 = vand.u32 2147483647, %v1841
        %v1844 = vcvt.s32.f32 %v1837
        %v1845 = vmul.f32 %v1844, %v1842
        %v1846 = vxor.u32 %v1845, 2147483648
        %v1847 = vsel %vm1764, %v1846, %v1845
        %v1848 = vsub.s32 4, %v1824
        %v1849 = vsel %vm1764, %v1848, %v1824
        %v1850 = vsel %vm1763, %v304, %v1847
        %v1851 = vsel %vm1763, 0, %v1849
        %v1852 = vcosq.f32.pop %v1850
        %v1853 = vsinq.f32.pop %v1850
        %vm1854 = vweird.f32 %v304
        %v1855 = vand.u32 %v1851, 3
        %vm1856 = vcmp.lt.s32.totalorder %v1855, 2
        %vm1857 = vcmp.eq.s32.totalorder %v1855, 0
        %v1858 = vxor.u32 %v1853, 2147483648
        %v1859 = vsel %vm1857, %v1852, %v1858
        %vm1860 = vcmp.eq.s32.totalorder %v1855, 2
        %v1861 = vxor.u32 %v1852, 2147483648
        %v1862 = vsel %vm1860, %v1861, %v1853
        %v1863 = vsel %vm1856, %v1859, %v1862
        %v1864 = vsel %vm1854, nan, %v1863
        %v1865 = vand.u32 2147483647, %v309
        %vm1866 = vcmp.le.f32.partialorder %v1865, 0.7853982
        %vm1867 = vcmp.lt.s32.totalorder %v309, 0
        %v1868 = vand.u32 %v309, 2139095040
        %v1869 = vshrl.u32 %v1868, 23
        %v1870 = vsub.s32 %v1869, 127
        %v1871 = vand.u32 2147483647, %v309
        %v1872 = vand.u32 %v1871, 8388607
        %v1873 = vor.u32 %v1872, 8388608
        %v1874 = vsub.s32 0, %v1873
        %v1875 = vadd.s32 %v1870, 1
        %vm1876 = vcmp.gt.s32.totalorder %v1875, 0
        %v1877 = vsel %vm1876, %v1875, 0
        %v1878 = vshrl.u32 %v1877, 5
        %v1879 = vand.u32 %v1877, 31
        %v1880 = vsub.s32 32, %v1879
        %v1881 = vshrl.u32 683565275, %v1880
        %v1882 = vshll.u32 683565275, %v1879
        %v1883 = vshrl.u32 2475754826, %v1880
        %v1884 = vor.u32 %v1882, %v1883
        %v1885 = vshll.u32 2475754826, %v1879
        %v1886 = vshrl.u32 2131351028, %v1880
        %v1887 = vor.u32 %v1885, %v1886
        %v1888 = vshll.u32 2131351028, %v1879
        %v1889 = vshrl.u32 2102212464, %v1880
        %v1890 = vor.u32 %v1888, %v1889
        %v1891 = vshll.u32 2102212464, %v1879
        %v1892 = vshrl.u32 920167782, %v1880
        %v1893 = vor.u32 %v1891, %v1892
        %v1894 = vshll.u32 920167782, %v1879
        %v1895 = vshrl.u32 1326507024, %v1880
        %v1896 = vor.u32 %v1894, %v1895
        %vm1897 = vcmp.lt.s32.totalorder %v1878, 1
        %vm1898 = vcmp.lt.s32.totalorder %v1878, 2
        %vm1899 = vcmp.lt.s32.totalorder %v1878, 3
        %vm1900 = vcmp.lt.s32.totalorder %v1878, 4
        %v1901 = vsel %vm1897, %v1881, %v1884
        %v1902 = vsel %vm1900, %v1890, 2102212464
        %v1903 = vsel %vm1899, %v1887, %v1902
        %v1904 = vsel %vm1898, %v1901, %v1903
        %v1905 = vsel %vm1897, %v1884, %v1887
        %v1906 = vsel %vm1900, %v1893, 920167782
        %v1907 = vsel %vm1899, %v1890, %v1906
        %v1908 = vsel %vm1898, %v1905, %v1907
        %v1909 = vsel %vm1897, %v1887, %v1890
        %v1910 = vsel %vm1900, %v1896, 1326507024
        %v1911 = vsel %vm1899, %v1893, %v1910
        %v1912 = vsel %vm1898, %v1909, %v1911
        %v1913 = vshll.u32 %v1873, 8
        %v1914 = vmul.u32.u64.compose %v1913, %v1912
        %v1915 = vextract.low.u32 %v1914
        %v1916 = vextract.high.u32 %v1914
        %v1917 = vmul.u32.u64.compose %v1913, %v1908
        %v1918 = vextract.low.u32 %v1917
        %v1919 = vextract.high.u32 %v1917
        %v1920 = vmul.u32 %v1913, %v1904
        %v1921 = vadd.s32 %v1916, %v1918
        %vm1922 = vc.u32 %v1916, %v1918
        %v1923 = vadd.s32 %v1919, 1
        %v1924 = vsel %vm1922, %v1923, %v1919
        %v1925 = vadd.s32 %v1920, %v1924
        %v1926 = vadd.s32 %v1925, 536870912
        %v1927 = vshrl.u32 %v1926, 30
        %v1928 = vshll.u32 %v1927, 30
        %v1929 = vsub.s32 %v1925, %v1928
        %vm1930 = vcmp.lt.s32.totalorder %v1929, 0
        %v1931 = vsub.s32 0, %v1929
        %v1932 = vsel %vm1930, %v1931, %v1929
        %v1933 = vclz %v1932
        %v1934 = vsub.s32 %v1933, 2
        %vm1935 = vcmp.gt.s32.totalorder 0, %v1934
        %v1936 = vsel %vm1935, 0, %v1934
        %v1937 = vsub.s32 32, %v1936
        %v1938 = vshll.u32 %v1929, %v1936
        %v1939 = vshrl.u32 %v1921, %v1937
        %v1940 = vor.u32 %v1938, %v1939
        %v1941 = vsub.s32 4294967266, %v1936
        %v1942 = vadd.s32 %v1941, 127
        %v1943 = vshll.u32 %v1942, 23
        %v1944 = vor.u32 4788187, %v1943
        %v1945 = vand.u32 2147483647, %v1944
        %v1947 = vcvt.s32.f32 %v1940
        %v1948 = vmul.f32 %v1947, %v1945
        %v1949 = vxor.u32 %v1948, 2147483648
        %v1950 = vsel %vm1867, %v1949, %v1948
        %v1951 = vsub.s32 4, %v1927
        %v1952 = vsel %vm1867, %v1951, %v1927
        %v1953 = vsel %vm1866, %v309, %v1950
        %v1954 = vsel %vm1866, 0, %v1952
        %v1955 = vcosq.f32.pop %v1953
        %v1956 = vsinq.f32.pop %v1953
        %vm1957 = vweird.f32 %v309
        %v1958 = vand.u32 %v1954, 3
        %vm1959 = vcmp.lt.s32.totalorder %v1958, 2
        %vm1960 = vcmp.eq.s32.totalorder %v1958, 0
        %v1961 = vxor.u32 %v1956, 2147483648
        %v1962 = vsel %vm1960, %v1955, %v1961
        %vm1963 = vcmp.eq.s32.totalorder %v1958, 2
        %v1964 = vxor.u32 %v1955, 2147483648
        %v1965 = vsel %vm1963, %v1964, %v1956
        %v1966 = vsel %vm1959, %v1962, %v1965
        %v1967 = vsel %vm1957, nan, %v1966
        %1976 = vrot.lane.b32.xlu0 %v1246, 16
        %v1977 = vpop.permute.xlu0 %1976
        %1978 = vrot.lane.b32.xlu0 %v1349, 16
        %v1979 = vpop.permute.xlu0 %1978
        %1980 = vrot.lane.b32.xlu0 %v1452, 16
        %v1981 = vpop.permute.xlu0 %1980
        %1982 = vrot.lane.b32.xlu0 %v1555, 16
        %v1983 = vpop.permute.xlu0 %1982
        %1984 = vrot.lane.b32.xlu0 %v1658, 16
        %v1985 = vpop.permute.xlu0 %1984
        %1986 = vrot.lane.b32.xlu0 %v1761, 16
        %v1987 = vpop.permute.xlu0 %1986
        %1988 = vrot.lane.b32.xlu0 %v1864, 16
        %v1989 = vpop.permute.xlu0 %1988
        %1990 = vrot.lane.b32.xlu0 %v1967, 16
        %v1991 = vpop.permute.xlu0 %1990
        %vm2000 = vcmask 130048
        %v2001 = vsel %vm2000, %v415, %v1977
        %v2002 = vsel %vm2000, %v519, %v1979
        %v2003 = vsel %vm2000, %v623, %v1981
        %v2004 = vsel %vm2000, %v727, %v1983
        %v2005 = vsel %vm2000, %v831, %v1985
        %v2006 = vsel %vm2000, %v935, %v1987
        %v2007 = vsel %vm2000, %v1039, %v1989
        %v2008 = vsel %vm2000, %v1143, %v1991
        %vm2009 = vcmask 261120
        %2010 = vst.msk [vmem:[%s157] sm:$0xff] %vm2009, %v2001
        %2011 = vst.msk [vmem:[%s157 + $0x8] sm:$0xff] %vm2009, %v2002
        %2012 = vst.msk [vmem:[%s157 + $0x10] sm:$0xff] %vm2009, %v2003
        %2013 = vst.msk [vmem:[%s157 + $0x18] sm:$0xff] %vm2009, %v2004
        %2014 = vst.msk [vmem:[%s157 + $0x20] sm:$0xff] %vm2009, %v2005
        %2015 = vst.msk [vmem:[%s157 + $0x28] sm:$0xff] %vm2009, %v2006
        %2016 = vst.msk [vmem:[%s157 + $0x30] sm:$0xff] %vm2009, %v2007
        %2017 = vst.msk [vmem:[%s157 + $0x38] sm:$0xff] %vm2009, %v2008
        %2026 = vrot.lane.b32.xlu0 %v415, 112
        %v2027 = vpop.permute.xlu0 %2026
        %2028 = vrot.lane.b32.xlu0 %v519, 112
        %v2029 = vpop.permute.xlu0 %2028
        %2030 = vrot.lane.b32.xlu0 %v623, 112
        %v2031 = vpop.permute.xlu0 %2030
        %2032 = vrot.lane.b32.xlu0 %v727, 112
        %v2033 = vpop.permute.xlu0 %2032
        %2034 = vrot.lane.b32.xlu0 %v831, 112
        %v2035 = vpop.permute.xlu0 %2034
        %2036 = vrot.lane.b32.xlu0 %v935, 112
        %v2037 = vpop.permute.xlu0 %2036
        %2038 = vrot.lane.b32.xlu0 %v1039, 112
        %v2039 = vpop.permute.xlu0 %2038
        %2040 = vrot.lane.b32.xlu0 %v1143, 112
        %v2041 = vpop.permute.xlu0 %2040
        %v2050 = vsel %vm2000, %v2027, %v1246
        %v2051 = vsel %vm2000, %v2029, %v1349
        %v2052 = vsel %vm2000, %v2031, %v1452
        %v2053 = vsel %vm2000, %v2033, %v1555
        %v2054 = vsel %vm2000, %v2035, %v1658
        %v2055 = vsel %vm2000, %v2037, %v1761
        %v2056 = vsel %vm2000, %v2039, %v1864
        %v2057 = vsel %vm2000, %v2041, %v1967
        %s2058 = scalar_lea.vmem %s157, 64 [#allocation2]
        %2059 = vst.msk [vmem:[%s2058] sm:$0xff] %vm2009, %v2050
        %2060 = vst.msk [vmem:[%s2058 + $0x8] sm:$0xff] %vm2009, %v2051
        %2061 = vst.msk [vmem:[%s2058 + $0x10] sm:$0xff] %vm2009, %v2052
        %2062 = vst.msk [vmem:[%s2058 + $0x18] sm:$0xff] %vm2009, %v2053
        %2063 = vst.msk [vmem:[%s2058 + $0x20] sm:$0xff] %vm2009, %v2054
        %2064 = vst.msk [vmem:[%s2058 + $0x28] sm:$0xff] %vm2009, %v2055
        %2065 = vst.msk [vmem:[%s2058 + $0x30] sm:$0xff] %vm2009, %v2056
        %2066 = vst.msk [vmem:[%s2058 + $0x38] sm:$0xff] %vm2009, %v2057
        %2067 = vrot.lane.b32.xlu0 %v415, 96
        %v2068 = vpop.permute.xlu0 %2067
        %2069 = vrot.lane.b32.xlu0 %v519, 96
        %v2070 = vpop.permute.xlu0 %2069
        %2071 = vrot.lane.b32.xlu0 %v623, 96
        %v2072 = vpop.permute.xlu0 %2071
        %2073 = vrot.lane.b32.xlu0 %v727, 96
        %v2074 = vpop.permute.xlu0 %2073
        %2075 = vrot.lane.b32.xlu0 %v831, 96
        %v2076 = vpop.permute.xlu0 %2075
        %2077 = vrot.lane.b32.xlu0 %v935, 96
        %v2078 = vpop.permute.xlu0 %2077
        %2079 = vrot.lane.b32.xlu0 %v1039, 96
        %v2080 = vpop.permute.xlu0 %2079
        %2081 = vrot.lane.b32.xlu0 %v1143, 96
        %v2082 = vpop.permute.xlu0 %2081
        %2091 = vrot.lane.b32.xlu0 %v1246, 112
        %v2092 = vpop.permute.xlu0 %2091
        %2093 = vrot.lane.b32.xlu0 %v1349, 112
        %v2094 = vpop.permute.xlu0 %2093
        %2095 = vrot.lane.b32.xlu0 %v1452, 112
        %v2096 = vpop.permute.xlu0 %2095
        %2097 = vrot.lane.b32.xlu0 %v1555, 112
        %v2098 = vpop.permute.xlu0 %2097
        %2099 = vrot.lane.b32.xlu0 %v1658, 112
        %v2100 = vpop.permute.xlu0 %2099
        %2101 = vrot.lane.b32.xlu0 %v1761, 112
        %v2102 = vpop.permute.xlu0 %2101
        %2103 = vrot.lane.b32.xlu0 %v1864, 112
        %v2104 = vpop.permute.xlu0 %2103
        %2105 = vrot.lane.b32.xlu0 %v1967, 112
        %v2106 = vpop.permute.xlu0 %2105
        %v2115 = vsel %vm2000, %v2068, %v2092
        %v2116 = vsel %vm2000, %v2070, %v2094
        %v2117 = vsel %vm2000, %v2072, %v2096
        %v2118 = vsel %vm2000, %v2074, %v2098
        %v2119 = vsel %vm2000, %v2076, %v2100
        %v2120 = vsel %vm2000, %v2078, %v2102
        %v2121 = vsel %vm2000, %v2080, %v2104
        %v2122 = vsel %vm2000, %v2082, %v2106
        %s2123 = scalar_lea.vmem %s157, 128 [#allocation2]
        %2124 = vst.msk [vmem:[%s2123] sm:$0xff] %vm2009, %v2115
        %2125 = vst.msk [vmem:[%s2123 + $0x8] sm:$0xff] %vm2009, %v2116
        %2126 = vst.msk [vmem:[%s2123 + $0x10] sm:$0xff] %vm2009, %v2117
        %2127 = vst.msk [vmem:[%s2123 + $0x18] sm:$0xff] %vm2009, %v2118
        %2128 = vst.msk [vmem:[%s2123 + $0x20] sm:$0xff] %vm2009, %v2119
        %2129 = vst.msk [vmem:[%s2123 + $0x28] sm:$0xff] %vm2009, %v2120
        %2130 = vst.msk [vmem:[%s2123 + $0x30] sm:$0xff] %vm2009, %v2121
        %2131 = vst.msk [vmem:[%s2123 + $0x38] sm:$0xff] %vm2009, %v2122
        %s2132 = sand.u32 %s84, 1
        %s2133 = sand.u32 %s84, 1
        %s2134 = smul.addr %s2133, 192
        %s2135 = scalar_lea.vmem [#allocation2], %s2134
        // Predicated region
        $region29: #{tpu_custom_call.1} parent=27 // pred_check
          %p2136 = pneg %p94
        $region30: #{tpu_custom_call.1} parent=27 // pred_check_branch
          %2138 = sbr.rel (%p2136) target = $region32
        $region31: #{tpu_custom_call.1} parent=27 // pred_region
          %s2139 = smul.u32 8, %s18
          %s2140 = smul.addr %s17, 8
          %s2141 = sadd.s32 %s2139, %s2140
          %s2142 = smul.addr %s2141, 8
          %s2143 = scalar_lea.vmem %s2, %s2142
          // Predicated region
          $region33: #{tpu_custom_call.1} parent=31 // pred_check
            _
          $region34: #{tpu_custom_call.1} parent=31 // pred_check_branch
            %2145 = sbr.rel (0) target = $region36
          $region35: #{tpu_custom_call.1} parent=31 // pred_region
            // Predicated region
            $region37: #{tpu_custom_call.1} parent=35 // pred_check
              _
            $region38: #{tpu_custom_call.1} parent=35 // pred_check_branch
              %2147 = sbr.rel (0) target = $region40
            $region39: #{tpu_custom_call.1} parent=35 // pred_region
              // Predicated region
              $region52: #{tpu_custom_call.1} parent=39 // pred_check
                _
              $region53: #{tpu_custom_call.1} parent=39 // pred_check_branch
                %2208 = sbr.rel (0) target = $region55
              $region54: #{tpu_custom_call.1} parent=39 // pred_region
                loop: start=0, step=1, limit=1
                $region56: #{tpu_custom_call.1} parent=54 // loop_pre_header
                  _
                $region57: #{tpu_custom_call.1} parent=54 // loop_header
                  %s2210 = sphi 0, %s2214
                  %p2211 = scmp.ge.s32.totalorder %s2210, 1
                  %s2215 = sphi %s2135, %s2135
                  %s2216 = sphi %s2143, %s2143
                $region58: #{tpu_custom_call.1} parent=54 // loop_header_branch
                  %2213 = sbr.rel (%p2211) target = $region62
                $region59: #{tpu_custom_call.1} parent=54 // loop_body
                  %v2217 = vld [vmem:[%s2215] sm:$0xff]
                  %2218 = vst [vmem:[%s2216] sm:$0xff] %v2217
                  %v2219 = vld [vmem:[%s2215 + $0x8] sm:$0xff]
                  %2220 = vst [vmem:[%s2216 + $0x8] sm:$0xff] %v2219
                  %v2221 = vld [vmem:[%s2215 + $0x10] sm:$0xff]
                  %2222 = vst [vmem:[%s2216 + $0x10] sm:$0xff] %v2221
                  %v2223 = vld [vmem:[%s2215 + $0x18] sm:$0xff]
                  %2224 = vst [vmem:[%s2216 + $0x18] sm:$0xff] %v2223
                  %v2225 = vld [vmem:[%s2215 + $0x20] sm:$0xff]
                  %2226 = vst [vmem:[%s2216 + $0x20] sm:$0xff] %v2225
                  %v2227 = vld [vmem:[%s2215 + $0x28] sm:$0xff]
                  %2228 = vst [vmem:[%s2216 + $0x28] sm:$0xff] %v2227
                  %v2229 = vld [vmem:[%s2215 + $0x30] sm:$0xff]
                  %2230 = vst [vmem:[%s2216 + $0x30] sm:$0xff] %v2229
                  %v2231 = vld [vmem:[%s2215 + $0x38] sm:$0xff]
                  %2232 = vst [vmem:[%s2216 + $0x38] sm:$0xff] %v2231
                  %v2233 = vld [vmem:[%s2215 + $0x40] sm:$0xff]
                  %2234 = vst [vmem:[%s2216 + $0x80] sm:$0xff] %v2233
                  %v2235 = vld [vmem:[%s2215 + $0x48] sm:$0xff]
                  %2236 = vst [vmem:[%s2216 + $0x88] sm:$0xff] %v2235
                  %v2237 = vld [vmem:[%s2215 + $0x50] sm:$0xff]
                  %2238 = vst [vmem:[%s2216 + $0x90] sm:$0xff] %v2237
                  %v2239 = vld [vmem:[%s2215 + $0x58] sm:$0xff]
                  %2240 = vst [vmem:[%s2216 + $0x98] sm:$0xff] %v2239
                  %v2241 = vld [vmem:[%s2215 + $0x60] sm:$0xff]
                  %2242 = vst [vmem:[%s2216 + $0xa0] sm:$0xff] %v2241
                  %v2243 = vld [vmem:[%s2215 + $0x68] sm:$0xff]
                  %2244 = vst [vmem:[%s2216 + $0xa8] sm:$0xff] %v2243
                  %v2245 = vld [vmem:[%s2215 + $0x70] sm:$0xff]
                  %2246 = vst [vmem:[%s2216 + $0xb0] sm:$0xff] %v2245
                  %v2247 = vld [vmem:[%s2215 + $0x78] sm:$0xff]
                  %2248 = vst [vmem:[%s2216 + $0xb8] sm:$0xff] %v2247
                  %v2249 = vld [vmem:[%s2215 + $0x80] sm:$0xff]
                  %2250 = vst [vmem:[%s2216 + $0x100] sm:$0xff] %v2249
                  %v2251 = vld [vmem:[%s2215 + $0x88] sm:$0xff]
                  %2252 = vst [vmem:[%s2216 + $0x108] sm:$0xff] %v2251
                  %v2253 = vld [vmem:[%s2215 + $0x90] sm:$0xff]
                  %2254 = vst [vmem:[%s2216 + $0x110] sm:$0xff] %v2253
                  %v2255 = vld [vmem:[%s2215 + $0x98] sm:$0xff]
                  %2256 = vst [vmem:[%s2216 + $0x118] sm:$0xff] %v2255
                  %v2257 = vld [vmem:[%s2215 + $0xa0] sm:$0xff]
                  %2258 = vst [vmem:[%s2216 + $0x120] sm:$0xff] %v2257
                  %v2259 = vld [vmem:[%s2215 + $0xa8] sm:$0xff]
                  %2260 = vst [vmem:[%s2216 + $0x128] sm:$0xff] %v2259
                  %v2261 = vld [vmem:[%s2215 + $0xb0] sm:$0xff]
                  %2262 = vst [vmem:[%s2216 + $0x130] sm:$0xff] %v2261
                  %v2263 = vld [vmem:[%s2215 + $0xb8] sm:$0xff]
                  %2264 = vst [vmem:[%s2216 + $0x138] sm:$0xff] %v2263
                $region60: #{tpu_custom_call.1} parent=54 // loop_footer
                  %s2214 = sadd.s32 1, %s2210
                $region61: #{tpu_custom_call.1} parent=54 // loop_footer_branch
                  %2209 = sbr.rel target = $region57
                $region62: #{tpu_custom_call.1} parent=54 // loop_exit
                  _
              $region55: #{tpu_custom_call.1} parent=39 // pred_fallthru
                _
              // Predicated region
              $region63: #{tpu_custom_call.1} parent=39 // pred_check
                _
              $region64: #{tpu_custom_call.1} parent=39 // pred_check_branch
                %2266 = sbr.rel target = $region66
              $region65: #{tpu_custom_call.1} parent=39 // pred_region
                _
              $region66: #{tpu_custom_call.1} parent=39 // pred_fallthru
                _
            $region40: #{tpu_custom_call.1} parent=35 // pred_fallthru
              _
            // Predicated region
            $region41: #{tpu_custom_call.1} parent=35 // pred_check
              _
            $region42: #{tpu_custom_call.1} parent=35 // pred_check_branch
              %2149 = sbr.rel target = $region44
            $region43: #{tpu_custom_call.1} parent=35 // pred_region
              loop: start=0, step=1, limit=1
              $region45: #{tpu_custom_call.1} parent=43 // loop_pre_header
                _
              $region46: #{tpu_custom_call.1} parent=43 // loop_header
                %s2152 = sphi 0, %s2156
                %p2153 = scmp.ge.s32.totalorder %s2152, 1
                %s2157 = sphi %s2135, %s2135
                %s2158 = sphi %s2143, %s2143
              $region47: #{tpu_custom_call.1} parent=43 // loop_header_branch
                %2155 = sbr.rel (%p2153) target = $region51
              $region48: #{tpu_custom_call.1} parent=43 // loop_body
                %v2159 = vld [vmem:[%s2157] sm:$0xff]
                %2160 = vst [vmem:[%s2158] sm:$0xff] %v2159
                %v2161 = vld [vmem:[%s2157 + $0x8] sm:$0xff]
                %2162 = vst [vmem:[%s2158 + $0x8] sm:$0xff] %v2161
                %v2163 = vld [vmem:[%s2157 + $0x10] sm:$0xff]
                %2164 = vst [vmem:[%s2158 + $0x10] sm:$0xff] %v2163
                %v2165 = vld [vmem:[%s2157 + $0x18] sm:$0xff]
                %2166 = vst [vmem:[%s2158 + $0x18] sm:$0xff] %v2165
                %v2167 = vld [vmem:[%s2157 + $0x20] sm:$0xff]
                %2168 = vst [vmem:[%s2158 + $0x20] sm:$0xff] %v2167
                %v2169 = vld [vmem:[%s2157 + $0x28] sm:$0xff]
                %2170 = vst [vmem:[%s2158 + $0x28] sm:$0xff] %v2169
                %v2171 = vld [vmem:[%s2157 + $0x30] sm:$0xff]
                %2172 = vst [vmem:[%s2158 + $0x30] sm:$0xff] %v2171
                %v2173 = vld [vmem:[%s2157 + $0x38] sm:$0xff]
                %2174 = vst [vmem:[%s2158 + $0x38] sm:$0xff] %v2173
                %v2175 = vld [vmem:[%s2157 + $0x40] sm:$0xff]
                %2176 = vst [vmem:[%s2158 + $0x80] sm:$0xff] %v2175
                %v2177 = vld [vmem:[%s2157 + $0x48] sm:$0xff]
                %2178 = vst [vmem:[%s2158 + $0x88] sm:$0xff] %v2177
                %v2179 = vld [vmem:[%s2157 + $0x50] sm:$0xff]
                %2180 = vst [vmem:[%s2158 + $0x90] sm:$0xff] %v2179
                %v2181 = vld [vmem:[%s2157 + $0x58] sm:$0xff]
                %2182 = vst [vmem:[%s2158 + $0x98] sm:$0xff] %v2181
                %v2183 = vld [vmem:[%s2157 + $0x60] sm:$0xff]
                %2184 = vst [vmem:[%s2158 + $0xa0] sm:$0xff] %v2183
                %v2185 = vld [vmem:[%s2157 + $0x68] sm:$0xff]
                %2186 = vst [vmem:[%s2158 + $0xa8] sm:$0xff] %v2185
                %v2187 = vld [vmem:[%s2157 + $0x70] sm:$0xff]
                %2188 = vst [vmem:[%s2158 + $0xb0] sm:$0xff] %v2187
                %v2189 = vld [vmem:[%s2157 + $0x78] sm:$0xff]
                %2190 = vst [vmem:[%s2158 + $0xb8] sm:$0xff] %v2189
                %v2191 = vld [vmem:[%s2157 + $0x80] sm:$0xff]
                %2192 = vst [vmem:[%s2158 + $0x100] sm:$0xff] %v2191
                %v2193 = vld [vmem:[%s2157 + $0x88] sm:$0xff]
                %2194 = vst [vmem:[%s2158 + $0x108] sm:$0xff] %v2193
                %v2195 = vld [vmem:[%s2157 + $0x90] sm:$0xff]
                %2196 = vst [vmem:[%s2158 + $0x110] sm:$0xff] %v2195
                %v2197 = vld [vmem:[%s2157 + $0x98] sm:$0xff]
                %2198 = vst [vmem:[%s2158 + $0x118] sm:$0xff] %v2197
                %v2199 = vld [vmem:[%s2157 + $0xa0] sm:$0xff]
                %2200 = vst [vmem:[%s2158 + $0x120] sm:$0xff] %v2199
                %v2201 = vld [vmem:[%s2157 + $0xa8] sm:$0xff]
                %2202 = vst [vmem:[%s2158 + $0x128] sm:$0xff] %v2201
                %v2203 = vld [vmem:[%s2157 + $0xb0] sm:$0xff]
                %2204 = vst [vmem:[%s2158 + $0x130] sm:$0xff] %v2203
                %v2205 = vld [vmem:[%s2157 + $0xb8] sm:$0xff]
                %2206 = vst [vmem:[%s2158 + $0x138] sm:$0xff] %v2205
              $region49: #{tpu_custom_call.1} parent=43 // loop_footer
                %s2156 = sadd.s32 1, %s2152
              $region50: #{tpu_custom_call.1} parent=43 // loop_footer_branch
                %2151 = sbr.rel target = $region46
              $region51: #{tpu_custom_call.1} parent=43 // loop_exit
                _
            $region44: #{tpu_custom_call.1} parent=35 // pred_fallthru
              _
          $region36: #{tpu_custom_call.1} parent=31 // pred_fallthru
            _
          %2267 = vnop
        $region32: #{tpu_custom_call.1} parent=27 // pred_fallthru
          _
      $region28: #{tpu_custom_call.1} parent=5 // pred_fallthru
        _
      %p2268 = scmp.le.s32.totalorder 2, %s8
      // Predicated region
      $region67: #{tpu_custom_call.1} parent=5 // pred_check
        %p2269 = pneg %p2268
      $region68: #{tpu_custom_call.1} parent=5 // pred_check_branch
        %2271 = sbr.rel (%p2269) target = $region70
      $region69: #{tpu_custom_call.1} parent=5 // pred_region
        %s2272 = ssub.s32 %s8, 2
        // Predicated region
        $region71: #{tpu_custom_call.1} parent=69 // pred_check
          %p2273 = pneg %p100
        $region72: #{tpu_custom_call.1} parent=69 // pred_check_branch
          %2275 = sbr.rel (%p2273) target = $region74
        $region73: #{tpu_custom_call.1} parent=69 // pred_region
          %s2276 = sand.u32 %s85, 1
          %s2277 = sand.u32 %s85, 1
          %s2278 = smul.addr %s2277, 192
          %s2279 = scalar_lea.vmem [#allocation2], %s2278
        $region74: #{tpu_custom_call.1} parent=69 // pred_fallthru
          _
      $region70: #{tpu_custom_call.1} parent=5 // pred_fallthru
        _
    $region6: #{tpu_custom_call.1} parent=1 // loop_footer
      %s12 = sadd.s32 1, %s8
    $region7: #{tpu_custom_call.1} parent=1 // loop_footer_branch
      %7 = sbr.rel target = $region3
    $region8: #{tpu_custom_call.1} parent=1 // loop_exit
      _

</llo_original>
